<compile_context>
chip_gen: v6e
topology: v6e:2x2x1
jax: 0.10.0
libtpu: 0.0.40
codegen_flags: <defaults>
</compile_context>

<pallas_src>
import functools

import jax
import jax.numpy as jnp
from jax.experimental import pallas as pl
from jax.experimental.pallas import tpu as pltpu


def _rev_block_kernel(dim,
                      x_ref,
                      wf1_ref, bf1_ref, wf2_ref, bf2_ref,
                      wg1_ref, bg1_ref, wg2_ref, bg2_ref,
                      out_ref):
    """One grid step: a (row_tile, 2*D) slab of tokens through the block.

    dim is a Python int multiple of 128, so the column-half slices below are
    static, full-lane (unmasked) accesses of the VMEM tiles.
    """
    x1 = x_ref[:, :dim]                   # (row_tile, D) f32
    x2 = x_ref[:, dim:]                   # (row_tile, D) f32

    def mlp(v_f32, w1_ref, b1_ref, w2_ref, b2_ref):
        # bf16 MXU operands, f32 accumulation; GELU / bias adds stay in f32.
        h = jnp.dot(v_f32.astype(jnp.bfloat16), w1_ref[...],
                    preferred_element_type=jnp.float32) + b1_ref[...]
        h = jax.nn.gelu(h)
        return jnp.dot(h.astype(jnp.bfloat16), w2_ref[...],
                       preferred_element_type=jnp.float32) + b2_ref[...]

    # y1 = x1 + f(x2); y2 = x2 + g(y1)   (residual adds in f32)
    y1 = x1 + mlp(x2, wf1_ref, bf1_ref, wf2_ref, bf2_ref)
    y2 = x2 + mlp(y1, wg1_ref, bg1_ref, wg2_ref, bg2_ref)

    # Fused "concat": lane-aligned, unmasked stores into the two column halves.
    out_ref[:, :dim] = y1.astype(out_ref.dtype)
    out_ref[:, dim:] = y2.astype(out_ref.dtype)


def _pick_row_tile(rows, requested, min_steps=8):
    """Largest multiple of 8 <= requested that divides rows and (when rows
    allow it) yields at least `min_steps` grid steps, so the 2-deep pipeline
    reaches steady state and both v7x TensorCores get work."""
    t = max(8, min(requested, rows))
    t -= t % 8
    t = max(t, 8)
    while t > 8 and (rows % t != 0 or rows // t < min_steps):
        t -= 8
    if rows % t != 0:
        t = 8
    return t


def reversible_block_forward(x, params, *, row_tile=256, out_dtype=None):
    """x: (B, S, 2*D) float32. params: dict of f/g MLP weights (float32)."""
    B, S, two_d = x.shape
    dim = two_d // 2
    assert two_d == 2 * dim
    assert dim % 128 == 0, "D must be a multiple of 128 for lane-dense halves"
    hidden = params["wf1"].shape[1]
    out_dtype = x.dtype if out_dtype is None else jnp.dtype(out_dtype)

    rows = B * S
    assert rows % 8 == 0, "B*S must be a multiple of 8"
    row_tile = _pick_row_tile(rows, row_tile)
    grid = (rows // row_tile,)

    # Free, contiguous view: the split/concat happen inside the kernel.
    x_flat = x.reshape(rows, two_d)

    # bf16 weights halve DMA bytes / VMEM; biases stay f32 (added after the
    # f32 accumulation), kept 2D so they are plain VMEM tiles.
    wf1 = params["wf1"].astype(jnp.bfloat16)
    wf2 = params["wf2"].astype(jnp.bfloat16)
    wg1 = params["wg1"].astype(jnp.bfloat16)
    wg2 = params["wg2"].astype(jnp.bfloat16)
    bf1 = params["bf1"].reshape(1, hidden)
    bf2 = params["bf2"].reshape(1, dim)
    bg1 = params["bg1"].reshape(1, hidden)
    bg2 = params["bg2"].reshape(1, dim)

    # Whole-array weight residents: if double-buffering them would eat a big
    # chunk of v7x's 64 MiB VMEM (scaled-up D/H), single-buffer them -- their
    # block index never changes across the grid, so no re-DMA is needed.
    weight_bytes = 4 * dim * hidden * 2            # four bf16 matrices, once
    single_buffer_weights = 2 * weight_bytes > (16 << 20)

    def full(shape):
        if single_buffer_weights:
            return pl.BlockSpec(shape, lambda i: (0, 0),
                                pipeline_mode=pl.Buffered(1))
        return pl.BlockSpec(shape, lambda i: (0, 0))

    x_spec = pl.BlockSpec((row_tile, two_d), lambda i: (i, 0))
    out_spec = pl.BlockSpec((row_tile, two_d), lambda i: (i, 0))

    # Advisory cost for XLA scheduling: 4 matmuls of 2*D*H flops per row,
    # 2 GELUs per hidden element; fused input + fused output + bf16 weights
    # (once) + all four f32 biases.
    cost = pl.CostEstimate(
        flops=8 * rows * dim * hidden,
        transcendentals=2 * rows * hidden,
        bytes_accessed=rows * two_d * x.dtype.itemsize
                       + rows * two_d * out_dtype.itemsize
                       + weight_bytes
                       + 2 * (hidden + dim) * 4,
    )

    out = pl.pallas_call(
        functools.partial(_rev_block_kernel, dim),
        grid=grid,
        in_specs=[
            x_spec,                                   # fused x (both halves)
            full((dim, hidden)), full((1, hidden)),   # wf1, bf1
            full((hidden, dim)), full((1, dim)),      # wf2, bf2
            full((dim, hidden)), full((1, hidden)),   # wg1, bg1
            full((hidden, dim)), full((1, dim)),      # wg2, bg2
        ],
        out_specs=out_spec,
        out_shape=jax.ShapeDtypeStruct((rows, two_d), out_dtype),
        compiler_params=pltpu.CompilerParams(
            dimension_semantics=("parallel",),
            # Past the 16/32 MiB scoped defaults on v5e/v6e so bigger tiles
            # don't OOM; actual usage at these sizes is ~2 MiB.
            vmem_limit_bytes=64 << 20),
        cost_estimate=cost,
    )(x_flat, wf1, bf1, wf2, bf2, wg1, bg1, wg2, bg2)

    return out.reshape(B, S, two_d)


def _reference_forward(x, params):
    """Pure-JAX reference with identical dtype handling (bf16 matmul operands,
    f32 accumulation, f32 GELU/residuals) so the tolerance check is tight."""
    dim = params["wf1"].shape[0]
    x1, x2 = x[..., :dim], x[..., dim:]

    def mlp(v, w1, b1, w2, b2):
        h = jnp.dot(v.astype(jnp.bfloat16), w1.astype(jnp.bfloat16),
                    preferred_element_type=jnp.float32) + b1
        h = jax.nn.gelu(h)
        return jnp.dot(h.astype(jnp.bfloat16), w2.astype(jnp.bfloat16),
                       preferred_element_type=jnp.float32) + b2

    y1 = x1 + mlp(x2, params["wf1"], params["bf1"], params["wf2"], params["bf2"])
    y2 = x2 + mlp(y1, params["wg1"], params["bg1"], params["wg2"], params["bg2"])
    return jnp.concatenate([y1, y2], axis=-1)


def _init_params(key, dim, hidden):
    ks = jax.random.split(key, 8)
    s1 = 1.0 / jnp.sqrt(dim)
    s2 = 1.0 / jnp.sqrt(hidden)
    return {
        "wf1": jax.random.normal(ks[0], (dim, hidden), jnp.float32) * s1,
        "bf1": jax.random.normal(ks[1], (hidden,), jnp.float32) * 0.01,
        "wf2": jax.random.normal(ks[2], (hidden, dim), jnp.float32) * s2,
        "bf2": jax.random.normal(ks[3], (dim,), jnp.float32) * 0.01,
        "wg1": jax.random.normal(ks[4], (dim, hidden), jnp.float32) * s1,
        "bg1": jax.random.normal(ks[5], (hidden,), jnp.float32) * 0.01,
        "wg2": jax.random.normal(ks[6], (hidden, dim), jnp.float32) * s2,
        "bg2": jax.random.normal(ks[7], (dim,), jnp.float32) * 0.01,
    }


if __name__ == "__main__":
    key = jax.random.PRNGKey(0)
    k_x, k_p = jax.random.split(key)

    # x is (B, S, 2*D). D/H are multiples of 128 so every access is lane-dense;
    # rows = B*S = 1024 -> row_tile auto-picks 128 -> 8 parallel grid steps.
    B, S, D, H = 2, 512, 128, 256
    x = jax.random.normal(k_x, (B, S, 2 * D), jnp.float32)
    params = _init_params(k_p, D, H)

    out = jax.block_until_ready(reversible_block_forward(x, params, row_tile=256))

    ref = jax.block_until_ready(_reference_forward(x, params))
    assert out.shape == (B, S, 2 * D)
    max_err = float(jnp.max(jnp.abs(out - ref)))
    assert jnp.allclose(out, ref, atol=2e-3, rtol=2e-3), \
        f"mismatch vs reference (max abs err {max_err})"

    print("KERNEL_OK")
</pallas_src>

<mosaic_0001>
module attributes {stable_mosaic.version = 11 : i64} {
  func.func @_rev_block_kernel(%arg0: i32, %arg1: memref<128x256xf32, #tpu.memory_space<vmem>>, %arg2: memref<128x256xbf16, #tpu.memory_space<vmem>>, %arg3: memref<1x256xf32, #tpu.memory_space<vmem>>, %arg4: memref<256x128xbf16, #tpu.memory_space<vmem>>, %arg5: memref<1x128xf32, #tpu.memory_space<vmem>>, %arg6: memref<128x256xbf16, #tpu.memory_space<vmem>>, %arg7: memref<1x256xf32, #tpu.memory_space<vmem>>, %arg8: memref<256x128xbf16, #tpu.memory_space<vmem>>, %arg9: memref<1x128xf32, #tpu.memory_space<vmem>>, %arg10: memref<128x256xf32, #tpu.memory_space<vmem>>) attributes {dimension_semantics = [#tpu.dimension_semantics<parallel>], iteration_bounds = array<i64: 8>, scalar_prefetch = 0 : i64, scratch_operands = 0 : i64, tpu.core_type = #tpu.core_type<tc>, window_params = [{transform_indices = @transform_0, window_bounds = array<i64: 128, 256>}, {pipeline_mode = #tpu.pipeline_mode<synchronous>, transform_indices = @transform_1, window_bounds = array<i64: 128, 256>}, {pipeline_mode = #tpu.pipeline_mode<synchronous>, transform_indices = @transform_2, window_bounds = array<i64: 1, 256>}, {pipeline_mode = #tpu.pipeline_mode<synchronous>, transform_indices = @transform_3, window_bounds = array<i64: 256, 128>}, {pipeline_mode = #tpu.pipeline_mode<synchronous>, transform_indices = @transform_4, window_bounds = array<i64: 1, 128>}, {pipeline_mode = #tpu.pipeline_mode<synchronous>, transform_indices = @transform_5, window_bounds = array<i64: 128, 256>}, {pipeline_mode = #tpu.pipeline_mode<synchronous>, transform_indices = @transform_6, window_bounds = array<i64: 1, 256>}, {pipeline_mode = #tpu.pipeline_mode<synchronous>, transform_indices = @transform_7, window_bounds = array<i64: 256, 128>}, {pipeline_mode = #tpu.pipeline_mode<synchronous>, transform_indices = @transform_8, window_bounds = array<i64: 1, 128>}, {transform_indices = @transform_9, window_bounds = array<i64: 128, 256>}]} {
    %c0 = arith.constant 0 : index
    %c0_0 = arith.constant 0 : index
    %0 = vector.load %arg1[%c0, %c0_0] : memref<128x256xf32, #tpu.memory_space<vmem>>, vector<128x128xf32>
    %c0_1 = arith.constant 0 : index
    %c128 = arith.constant 128 : index
    %1 = vector.load %arg1[%c0_1, %c128] : memref<128x256xf32, #tpu.memory_space<vmem>>, vector<128x128xf32>
    %2 = arith.truncf %1 : vector<128x128xf32> to vector<128x128xbf16>
    %c0_2 = arith.constant 0 : index
    %c0_3 = arith.constant 0 : index
    %3 = vector.load %arg2[%c0_2, %c0_3] : memref<128x256xbf16, #tpu.memory_space<vmem>>, vector<128x256xbf16>
    %cst = arith.constant dense<0.000000e+00> : vector<128x256xf32>
    %4 = tpu.matmul %2, %3, %cst {dimension_numbers = #tpu.dot_dimension_numbers<[1], [0], [0], [1], [0, 0, 1, 1], [], []>} : vector<128x128xbf16>, vector<128x256xbf16>, vector<128x256xf32> -> vector<128x256xf32>
    %c0_4 = arith.constant 0 : index
    %c0_5 = arith.constant 0 : index
    %5 = vector.load %arg3[%c0_4, %c0_5] : memref<1x256xf32, #tpu.memory_space<vmem>>, vector<1x256xf32>
    %6 = vector.broadcast %5 : vector<1x256xf32> to vector<128x256xf32>
    %7 = arith.addf %4, %6 : vector<128x256xf32>
    %8 = arith.mulf %7, %7 : vector<128x256xf32>
    %9 = arith.mulf %7, %8 : vector<128x256xf32>
    %cst_6 = arith.constant 4.471500e-02 : f32
    %10 = vector.broadcast %cst_6 : f32 to vector<128x256xf32>
    %11 = arith.mulf %10, %9 : vector<128x256xf32>
    %12 = arith.addf %7, %11 : vector<128x256xf32>
    %cst_7 = arith.constant 0.797884583 : f32
    %13 = vector.broadcast %cst_7 : f32 to vector<128x256xf32>
    %14 = arith.mulf %13, %12 : vector<128x256xf32>
    %15 = math.tanh %14 : vector<128x256xf32>
    %cst_8 = arith.constant 1.000000e+00 : f32
    %16 = vector.broadcast %cst_8 : f32 to vector<128x256xf32>
    %17 = arith.addf %16, %15 : vector<128x256xf32>
    %cst_9 = arith.constant 5.000000e-01 : f32
    %18 = vector.broadcast %cst_9 : f32 to vector<128x256xf32>
    %19 = arith.mulf %18, %17 : vector<128x256xf32>
    %20 = arith.mulf %7, %19 : vector<128x256xf32>
    %21 = arith.truncf %20 : vector<128x256xf32> to vector<128x256xbf16>
    %c0_10 = arith.constant 0 : index
    %c0_11 = arith.constant 0 : index
    %22 = vector.load %arg4[%c0_10, %c0_11] : memref<256x128xbf16, #tpu.memory_space<vmem>>, vector<256x128xbf16>
    %cst_12 = arith.constant dense<0.000000e+00> : vector<128x128xf32>
    %23 = tpu.matmul %21, %22, %cst_12 {dimension_numbers = #tpu.dot_dimension_numbers<[1], [0], [0], [1], [0, 0, 1, 1], [], []>} : vector<128x256xbf16>, vector<256x128xbf16>, vector<128x128xf32> -> vector<128x128xf32>
    %c0_13 = arith.constant 0 : index
    %c0_14 = arith.constant 0 : index
    %24 = vector.load %arg5[%c0_13, %c0_14] : memref<1x128xf32, #tpu.memory_space<vmem>>, vector<1x128xf32>
    %25 = vector.broadcast %24 : vector<1x128xf32> to vector<128x128xf32>
    %26 = arith.addf %23, %25 : vector<128x128xf32>
    %27 = arith.addf %0, %26 : vector<128x128xf32>
    %28 = arith.truncf %27 : vector<128x128xf32> to vector<128x128xbf16>
    %c0_15 = arith.constant 0 : index
    %c0_16 = arith.constant 0 : index
    %29 = vector.load %arg6[%c0_15, %c0_16] : memref<128x256xbf16, #tpu.memory_space<vmem>>, vector<128x256xbf16>
    %cst_17 = arith.constant dense<0.000000e+00> : vector<128x256xf32>
    %30 = tpu.matmul %28, %29, %cst_17 {dimension_numbers = #tpu.dot_dimension_numbers<[1], [0], [0], [1], [0, 0, 1, 1], [], []>} : vector<128x128xbf16>, vector<128x256xbf16>, vector<128x256xf32> -> vector<128x256xf32>
    %c0_18 = arith.constant 0 : index
    %c0_19 = arith.constant 0 : index
    %31 = vector.load %arg7[%c0_18, %c0_19] : memref<1x256xf32, #tpu.memory_space<vmem>>, vector<1x256xf32>
    %32 = vector.broadcast %31 : vector<1x256xf32> to vector<128x256xf32>
    %33 = arith.addf %30, %32 : vector<128x256xf32>
    %34 = arith.mulf %33, %33 : vector<128x256xf32>
    %35 = arith.mulf %33, %34 : vector<128x256xf32>
    %cst_20 = arith.constant 4.471500e-02 : f32
    %36 = vector.broadcast %cst_20 : f32 to vector<128x256xf32>
    %37 = arith.mulf %36, %35 : vector<128x256xf32>
    %38 = arith.addf %33, %37 : vector<128x256xf32>
    %cst_21 = arith.constant 0.797884583 : f32
    %39 = vector.broadcast %cst_21 : f32 to vector<128x256xf32>
    %40 = arith.mulf %39, %38 : vector<128x256xf32>
    %41 = math.tanh %40 : vector<128x256xf32>
    %cst_22 = arith.constant 1.000000e+00 : f32
    %42 = vector.broadcast %cst_22 : f32 to vector<128x256xf32>
    %43 = arith.addf %42, %41 : vector<128x256xf32>
    %cst_23 = arith.constant 5.000000e-01 : f32
    %44 = vector.broadcast %cst_23 : f32 to vector<128x256xf32>
    %45 = arith.mulf %44, %43 : vector<128x256xf32>
    %46 = arith.mulf %33, %45 : vector<128x256xf32>
    %47 = arith.truncf %46 : vector<128x256xf32> to vector<128x256xbf16>
    %c0_24 = arith.constant 0 : index
    %c0_25 = arith.constant 0 : index
    %48 = vector.load %arg8[%c0_24, %c0_25] : memref<256x128xbf16, #tpu.memory_space<vmem>>, vector<256x128xbf16>
    %cst_26 = arith.constant dense<0.000000e+00> : vector<128x128xf32>
    %49 = tpu.matmul %47, %48, %cst_26 {dimension_numbers = #tpu.dot_dimension_numbers<[1], [0], [0], [1], [0, 0, 1, 1], [], []>} : vector<128x256xbf16>, vector<256x128xbf16>, vector<128x128xf32> -> vector<128x128xf32>
    %c0_27 = arith.constant 0 : index
    %c0_28 = arith.constant 0 : index
    %50 = vector.load %arg9[%c0_27, %c0_28] : memref<1x128xf32, #tpu.memory_space<vmem>>, vector<1x128xf32>
    %51 = vector.broadcast %50 : vector<1x128xf32> to vector<128x128xf32>
    %52 = arith.addf %49, %51 : vector<128x128xf32>
    %53 = arith.addf %1, %52 : vector<128x128xf32>
    %c0_29 = arith.constant 0 : index
    %c0_30 = arith.constant 0 : index
    %54 = vector.load %arg10[%c0_29, %c0_30] : memref<128x256xf32, #tpu.memory_space<vmem>>, vector<128x128xf32>
    tpu.vector_store %arg10[%c0_29, %c0_30], %27 {strides = array<i32>} : memref<128x256xf32, #tpu.memory_space<vmem>>, vector<128x128xf32>,
    %c0_31 = arith.constant 0 : index
    %c128_32 = arith.constant 128 : index
    %55 = vector.load %arg10[%c0_31, %c128_32] : memref<128x256xf32, #tpu.memory_space<vmem>>, vector<128x128xf32>
    tpu.vector_store %arg10[%c0_31, %c128_32], %53 {strides = array<i32>} : memref<128x256xf32, #tpu.memory_space<vmem>>, vector<128x128xf32>,
    return
  }
  func.func @transform_0(%arg0: i32) -> (i32, i32) {
    %c0_i32 = arith.constant 0 : i32
    %c0_i32_0 = arith.constant 0 : i32
    return %arg0, %c0_i32 : i32, i32
  }
  func.func @transform_1(%arg0: i32) -> (i32, i32) {
    %c0_i32 = arith.constant 0 : i32
    %c0_i32_0 = arith.constant 0 : i32
    %c0_i32_1 = arith.constant 0 : i32
    return %c0_i32, %c0_i32_0 : i32, i32
  }
  func.func @transform_2(%arg0: i32) -> (i32, i32) {
    %c0_i32 = arith.constant 0 : i32
    %c0_i32_0 = arith.constant 0 : i32
    %c0_i32_1 = arith.constant 0 : i32
    return %c0_i32, %c0_i32_0 : i32, i32
  }
  func.func @transform_3(%arg0: i32) -> (i32, i32) {
    %c0_i32 = arith.constant 0 : i32
    %c0_i32_0 = arith.constant 0 : i32
    %c0_i32_1 = arith.constant 0 : i32
    return %c0_i32, %c0_i32_0 : i32, i32
  }
  func.func @transform_4(%arg0: i32) -> (i32, i32) {
    %c0_i32 = arith.constant 0 : i32
    %c0_i32_0 = arith.constant 0 : i32
    %c0_i32_1 = arith.constant 0 : i32
    return %c0_i32, %c0_i32_0 : i32, i32
  }
  func.func @transform_5(%arg0: i32) -> (i32, i32) {
    %c0_i32 = arith.constant 0 : i32
    %c0_i32_0 = arith.constant 0 : i32
    %c0_i32_1 = arith.constant 0 : i32
    return %c0_i32, %c0_i32_0 : i32, i32
  }
  func.func @transform_6(%arg0: i32) -> (i32, i32) {
    %c0_i32 = arith.constant 0 : i32
    %c0_i32_0 = arith.constant 0 : i32
    %c0_i32_1 = arith.constant 0 : i32
    return %c0_i32, %c0_i32_0 : i32, i32
  }
  func.func @transform_7(%arg0: i32) -> (i32, i32) {
    %c0_i32 = arith.constant 0 : i32
    %c0_i32_0 = arith.constant 0 : i32
    %c0_i32_1 = arith.constant 0 : i32
    return %c0_i32, %c0_i32_0 : i32, i32
  }
  func.func @transform_8(%arg0: i32) -> (i32, i32) {
    %c0_i32 = arith.constant 0 : i32
    %c0_i32_0 = arith.constant 0 : i32
    %c0_i32_1 = arith.constant 0 : i32
    return %c0_i32, %c0_i32_0 : i32, i32
  }
  func.func @transform_9(%arg0: i32) -> (i32, i32) {
    %c0_i32 = arith.constant 0 : i32
    %c0_i32_0 = arith.constant 0 : i32
    return %arg0, %c0_i32 : i32, i32
  }
}

</mosaic_0001>

<llo_original>
// kernel: tpu_custom_call.1
$region0: #{tpu_custom_call.1}
  #allocation0 [shape = 'u32[]', space=smem, size = 0x4, offset = 0x4, fixed_abs, tag = 'smem constant byte address 0x4 - core index']
  #allocation1 [shape = 'u32[144,128]{1,0:T(1,128)}', space=vmem, size = 0x12000, scoped, tag = 'internal scratch']
  %s0 = inlined_call_operand.hbm [shape: f32[1024,256], index: 0, kind: input, shape index: {}]
  %s1 = inlined_call_operand.hbm [shape: bf16[128,256], index: 1, kind: input, shape index: {}]
  %s2 = inlined_call_operand.vmem [shape: f32[1,256], index: 2, kind: input, shape index: {}]
  %s3 = inlined_call_operand.hbm [shape: bf16[256,128], index: 3, kind: input, shape index: {}]
  %s4 = inlined_call_operand.vmem [shape: f32[1,128], index: 4, kind: input, shape index: {}]
  %s5 = inlined_call_operand.hbm [shape: bf16[128,256], index: 5, kind: input, shape index: {}]
  %s6 = inlined_call_operand.vmem [shape: f32[1,256], index: 6, kind: input, shape index: {}]
  %s7 = inlined_call_operand.hbm [shape: bf16[256,128], index: 7, kind: input, shape index: {}]
  %s8 = inlined_call_operand.vmem [shape: f32[1,128], index: 8, kind: input, shape index: {}]
  %s9 = inlined_call_operand.hbm [shape: f32[1024,256], index: 9, kind: output, shape index: {}]
  %s10 = sld [smem:[#allocation0]]
  $region89: #{tpu_custom_call.1} parent=0
    _
  %s12 = ssub.s32 1, %s10
  %s13 = scalar_select 0, %s12, %s10
  $region1: #{tpu_custom_call.1} parent=0
    #allocation2 [shape = 'u8[262144]{0}', space=vmem, size = 0x40000, scoped, tag = 'input window, operand 0']
    #allocation3 [shape = 's32[2]{0}', space=sflag, size = 0x8, scoped, tag = 'scoped memory for tpu_custom_call.1']
    #allocation4 [shape = 's32[2]{0}', space=sflag, size = 0x8, scoped, tag = 'scoped memory for tpu_custom_call.1']
    #allocation5 [shape = 'u8[65536]{0}', space=vmem, size = 0x10000, scoped, tag = 'input window, operand 1, single buffered']
    #allocation6 [shape = 's32[1]{0}', space=sflag, size = 0x4, scoped, tag = 'scoped memory for tpu_custom_call.1']
    #allocation7 [shape = 'u8[65536]{0}', space=vmem, size = 0x10000, scoped, tag = 'input window, operand 3, single buffered']
    #allocation8 [shape = 'u8[65536]{0}', space=vmem, size = 0x10000, scoped, tag = 'input window, operand 5, single buffered']
    #allocation9 [shape = 's32[1]{0}', space=sflag, size = 0x4, scoped, tag = 'scoped memory for tpu_custom_call.1']
    #allocation10 [shape = 'u8[65536]{0}', space=vmem, size = 0x10000, scoped, tag = 'input window, operand 7, single buffered']
    #allocation11 [shape = 'u8[262144]{0}', space=vmem, size = 0x40000, scoped, tag = 'output window, operand 0']
    %14 = vsyncpa [#allocation3], 0
    %s15 = scalar_lea.sflag [#allocation3], 1
    %16 = vsyncpa %s15, 0
    %17 = vsyncpa [#allocation6], 0
    %18 = vsyncpa [#allocation9], 0
    %19 = vsyncpa [#allocation4], 0
    %s20 = scalar_lea.sflag [#allocation4], 1
    %21 = vsyncpa %s20, 0
    loop: start=0, step=1, limit=10
    $region2: #{tpu_custom_call.1} parent=1 // loop_pre_header
      _
    $region3: #{tpu_custom_call.1} parent=1 // loop_header
      %s23 = sphi 0, %s27
      %p24 = scmp.ge.s32.totalorder %s23, 10
      %s33 = sphi 0, %s35
      %s36 = sphi 0, %s33
      %s37 = sphi 0, %s36
      %s53 = sphi 0, %s37
      %s57 = sphi 0, %s57
      %s59 = sphi 0, %s57
      %s60 = sphi 0, %s59
      %s74 = sphi 0, %s60
      %s78 = sphi 0, %s78
      %s80 = sphi 0, %s78
      %s81 = sphi 0, %s80
      %s95 = sphi 0, %s81
      %s99 = sphi 0, %s99
      %s101 = sphi 0, %s99
      %s102 = sphi 0, %s101
      %s116 = sphi 0, %s102
      %s120 = sphi 0, %s120
      %s122 = sphi 0, %s120
      %s123 = sphi 0, %s122
      %s137 = sphi 0, %s123
      %s141 = sphi 0, %s141
      %s143 = sphi 0, %s141
      %s144 = sphi 0, %s143
      %s158 = sphi 0, %s144
      %s162 = sphi 0, %s162
      %s164 = sphi 0, %s162
      %s165 = sphi 0, %s164
      %s179 = sphi 0, %s165
      %s183 = sphi 0, %s183
      %s185 = sphi 0, %s183
      %s186 = sphi 0, %s185
      %s200 = sphi 0, %s186
      %s204 = sphi 0, %s204
      %s206 = sphi 0, %s204
      %s207 = sphi 0, %s206
      %s221 = sphi 0, %s207
      %s227 = sphi 0, %s229
      %s230 = sphi 0, %s227
      %s231 = sphi 0, %s230
      %s247 = sphi 0, %s231
    $region4: #{tpu_custom_call.1} parent=1 // loop_header_branch
      %26 = sbr.rel (%p24) target = $region8
    $region5: #{tpu_custom_call.1} parent=1 // loop_body
      %s28 = ssub.s32 %s23, 1
      %s29 = ssub.s32 %s23, 2
      %s30 = sadd.s32 %s23, 1
      %s31 = ssub.s32 %s23, %s30
      %p32 = scmp.eq.s32.totalorder %s31, 0
      %s34 = sadd.s32 %s33, 1
      %s35 = scalar_select %p32, %s33, %s34
      %p38 = pneg %p32
      %p39 = scmp.eq.s32.totalorder %s23, 7
      %p40 = por %p38, %p39
      %p41 = scmp.ne.s32.totalorder %s33, %s36
      %p42 = scmp.eq.s32.totalorder %s23, 0
      %p43 = por %p41, %p42
      %p44 = scmp.ne.s32.totalorder %s33, %s36
      %p45 = scmp.eq.s32.totalorder %s28, 7
      %p46 = por %p44, %p45
      %p47 = scmp.ne.s32.totalorder %s36, %s37
      %p48 = scmp.eq.s32.totalorder %s28, 0
      %p49 = por %p47, %p48
      %p50 = scmp.ne.s32.totalorder %s36, %s37
      %p51 = scmp.eq.s32.totalorder %s29, 7
      %p52 = por %p50, %p51
      %p54 = scmp.ne.s32.totalorder %s37, %s53
      %p55 = scmp.eq.s32.totalorder %s29, 0
      %p56 = por %p54, %p55
      %s58 = sadd.s32 %s57, 1
      %p61 = scmp.eq.s32.totalorder %s23, 7
      %p62 = scmp.ne.s32.totalorder %s57, %s59
      %p63 = scmp.eq.s32.totalorder %s23, 0
      %p64 = por %p62, %p63
      %p65 = scmp.ne.s32.totalorder %s57, %s59
      %p66 = scmp.eq.s32.totalorder %s28, 7
      %p67 = por %p65, %p66
      %p68 = scmp.ne.s32.totalorder %s59, %s60
      %p69 = scmp.eq.s32.totalorder %s28, 0
      %p70 = por %p68, %p69
      %p71 = scmp.ne.s32.totalorder %s59, %s60
      %p72 = scmp.eq.s32.totalorder %s29, 7
      %p73 = por %p71, %p72
      %p75 = scmp.ne.s32.totalorder %s60, %s74
      %p76 = scmp.eq.s32.totalorder %s29, 0
      %p77 = por %p75, %p76
      %s79 = sadd.s32 %s78, 1
      %p82 = scmp.eq.s32.totalorder %s23, 7
      %p83 = scmp.ne.s32.totalorder %s78, %s80
      %p84 = scmp.eq.s32.totalorder %s23, 0
      %p85 = por %p83, %p84
      %p86 = scmp.ne.s32.totalorder %s78, %s80
      %p87 = scmp.eq.s32.totalorder %s28, 7
      %p88 = por %p86, %p87
      %p89 = scmp.ne.s32.totalorder %s80, %s81
      %p90 = scmp.eq.s32.totalorder %s28, 0
      %p91 = por %p89, %p90
      %p92 = scmp.ne.s32.totalorder %s80, %s81
      %p93 = scmp.eq.s32.totalorder %s29, 7
      %p94 = por %p92, %p93
      %p96 = scmp.ne.s32.totalorder %s81, %s95
      %p97 = scmp.eq.s32.totalorder %s29, 0
      %p98 = por %p96, %p97
      %s100 = sadd.s32 %s99, 1
      %p103 = scmp.eq.s32.totalorder %s23, 7
      %p104 = scmp.ne.s32.totalorder %s99, %s101
      %p105 = scmp.eq.s32.totalorder %s23, 0
      %p106 = por %p104, %p105
      %p107 = scmp.ne.s32.totalorder %s99, %s101
      %p108 = scmp.eq.s32.totalorder %s28, 7
      %p109 = por %p107, %p108
      %p110 = scmp.ne.s32.totalorder %s101, %s102
      %p111 = scmp.eq.s32.totalorder %s28, 0
      %p112 = por %p110, %p111
      %p113 = scmp.ne.s32.totalorder %s101, %s102
      %p114 = scmp.eq.s32.totalorder %s29, 7
      %p115 = por %p113, %p114
      %p117 = scmp.ne.s32.totalorder %s102, %s116
      %p118 = scmp.eq.s32.totalorder %s29, 0
      %p119 = por %p117, %p118
      %s121 = sadd.s32 %s120, 1
      %p124 = scmp.eq.s32.totalorder %s23, 7
      %p125 = scmp.ne.s32.totalorder %s120, %s122
      %p126 = scmp.eq.s32.totalorder %s23, 0
      %p127 = por %p125, %p126
      %p128 = scmp.ne.s32.totalorder %s120, %s122
      %p129 = scmp.eq.s32.totalorder %s28, 7
      %p130 = por %p128, %p129
      %p131 = scmp.ne.s32.totalorder %s122, %s123
      %p132 = scmp.eq.s32.totalorder %s28, 0
      %p133 = por %p131, %p132
      %p134 = scmp.ne.s32.totalorder %s122, %s123
      %p135 = scmp.eq.s32.totalorder %s29, 7
      %p136 = por %p134, %p135
      %p138 = scmp.ne.s32.totalorder %s123, %s137
      %p139 = scmp.eq.s32.totalorder %s29, 0
      %p140 = por %p138, %p139
      %s142 = sadd.s32 %s141, 1
      %p145 = scmp.eq.s32.totalorder %s23, 7
      %p146 = scmp.ne.s32.totalorder %s141, %s143
      %p147 = scmp.eq.s32.totalorder %s23, 0
      %p148 = por %p146, %p147
      %p149 = scmp.ne.s32.totalorder %s141, %s143
      %p150 = scmp.eq.s32.totalorder %s28, 7
      %p151 = por %p149, %p150
      %p152 = scmp.ne.s32.totalorder %s143, %s144
      %p153 = scmp.eq.s32.totalorder %s28, 0
      %p154 = por %p152, %p153
      %p155 = scmp.ne.s32.totalorder %s143, %s144
      %p156 = scmp.eq.s32.totalorder %s29, 7
      %p157 = por %p155, %p156
      %p159 = scmp.ne.s32.totalorder %s144, %s158
      %p160 = scmp.eq.s32.totalorder %s29, 0
      %p161 = por %p159, %p160
      %s163 = sadd.s32 %s162, 1
      %p166 = scmp.eq.s32.totalorder %s23, 7
      %p167 = scmp.ne.s32.totalorder %s162, %s164
      %p168 = scmp.eq.s32.totalorder %s23, 0
      %p169 = por %p167, %p168
      %p170 = scmp.ne.s32.totalorder %s162, %s164
      %p171 = scmp.eq.s32.totalorder %s28, 7
      %p172 = por %p170, %p171
      %p173 = scmp.ne.s32.totalorder %s164, %s165
      %p174 = scmp.eq.s32.totalorder %s28, 0
      %p175 = por %p173, %p174
      %p176 = scmp.ne.s32.totalorder %s164, %s165
      %p177 = scmp.eq.s32.totalorder %s29, 7
      %p178 = por %p176, %p177
      %p180 = scmp.ne.s32.totalorder %s165, %s179
      %p181 = scmp.eq.s32.totalorder %s29, 0
      %p182 = por %p180, %p181
      %s184 = sadd.s32 %s183, 1
      %p187 = scmp.eq.s32.totalorder %s23, 7
      %p188 = scmp.ne.s32.totalorder %s183, %s185
      %p189 = scmp.eq.s32.totalorder %s23, 0
      %p190 = por %p188, %p189
      %p191 = scmp.ne.s32.totalorder %s183, %s185
      %p192 = scmp.eq.s32.totalorder %s28, 7
      %p193 = por %p191, %p192
      %p194 = scmp.ne.s32.totalorder %s185, %s186
      %p195 = scmp.eq.s32.totalorder %s28, 0
      %p196 = por %p194, %p195
      %p197 = scmp.ne.s32.totalorder %s185, %s186
      %p198 = scmp.eq.s32.totalorder %s29, 7
      %p199 = por %p197, %p198
      %p201 = scmp.ne.s32.totalorder %s186, %s200
      %p202 = scmp.eq.s32.totalorder %s29, 0
      %p203 = por %p201, %p202
      %s205 = sadd.s32 %s204, 1
      %p208 = scmp.eq.s32.totalorder %s23, 7
      %p209 = scmp.ne.s32.totalorder %s204, %s206
      %p210 = scmp.eq.s32.totalorder %s23, 0
      %p211 = por %p209, %p210
      %p212 = scmp.ne.s32.totalorder %s204, %s206
      %p213 = scmp.eq.s32.totalorder %s28, 7
      %p214 = por %p212, %p213
      %p215 = scmp.ne.s32.totalorder %s206, %s207
      %p216 = scmp.eq.s32.totalorder %s28, 0
      %p217 = por %p215, %p216
      %p218 = scmp.ne.s32.totalorder %s206, %s207
      %p219 = scmp.eq.s32.totalorder %s29, 7
      %p220 = por %p218, %p219
      %p222 = scmp.ne.s32.totalorder %s207, %s221
      %p223 = scmp.eq.s32.totalorder %s29, 0
      %p224 = por %p222, %p223
      %s225 = ssub.s32 %s23, %s30
      %p226 = scmp.eq.s32.totalorder %s225, 0
      %s228 = sadd.s32 %s227, 1
      %s229 = scalar_select %p226, %s227, %s228
      %p232 = pneg %p226
      %p233 = scmp.eq.s32.totalorder %s23, 7
      %p234 = por %p232, %p233
      %p235 = scmp.ne.s32.totalorder %s227, %s230
      %p236 = scmp.eq.s32.totalorder %s23, 0
      %p237 = por %p235, %p236
      %p238 = scmp.ne.s32.totalorder %s227, %s230
      %p239 = scmp.eq.s32.totalorder %s28, 7
      %p240 = por %p238, %p239
      %p241 = scmp.ne.s32.totalorder %s230, %s231
      %p242 = scmp.eq.s32.totalorder %s28, 0
      %p243 = por %p241, %p242
      %p244 = scmp.ne.s32.totalorder %s230, %s231
      %p245 = scmp.eq.s32.totalorder %s29, 7
      %p246 = por %p244, %p245
      %p248 = scmp.ne.s32.totalorder %s231, %s247
      %p249 = scmp.eq.s32.totalorder %s29, 0
      %p250 = por %p248, %p249
      %p251 = scmp.le.s32.totalorder 1, %s23
      %p252 = scmp.lt.s32.totalorder %s23, 9
      %p253 = pnand %p251, %p252
      %p254 = pneg %p253
      // Predicated region
      $region9: #{tpu_custom_call.1} parent=5 // pred_check
        _
      $region10: #{tpu_custom_call.1} parent=5 // pred_check_branch
        %256 = sbr.rel (%p253) target = $region12
      $region11: #{tpu_custom_call.1} parent=5 // pred_region
        %s257 = ssub.s32 %s23, 1
        // Predicated region
        $region13: #{tpu_custom_call.1} parent=11 // pred_check
          %p258 = pneg %p70
        $region14: #{tpu_custom_call.1} parent=11 // pred_check_branch
          %260 = sbr.rel (%p258) target = $region16
        $region15: #{tpu_custom_call.1} parent=11 // pred_region
          %s262 = ssub.s32 2048, 2048
          %263 = vsyncadd [#allocation6], %s262
          %s264 = sshll.u32 [#allocation5], 4
          %s265 = int_to_ptr.vmem [resolvable:$true] %s264
          %270 = dma.hbm_to_vmem [thread:$0]  %s1, 2048, %s265, [#allocation6], 128, 128, 8
        $region16: #{tpu_custom_call.1} parent=11 // pred_fallthru
          _
        // Predicated region
        $region17: #{tpu_custom_call.1} parent=11 // pred_check
          %p271 = pneg %p91
        $region18: #{tpu_custom_call.1} parent=11 // pred_check_branch
          %273 = sbr.rel (%p271) target = $region20
        $region19: #{tpu_custom_call.1} parent=11 // pred_region
          _
        $region20: #{tpu_custom_call.1} parent=11 // pred_fallthru
          _
        // Predicated region
        $region21: #{tpu_custom_call.1} parent=11 // pred_check
          %p274 = pneg %p112
        $region22: #{tpu_custom_call.1} parent=11 // pred_check_branch
          %276 = sbr.rel (%p274) target = $region24
        $region23: #{tpu_custom_call.1} parent=11 // pred_region
          %s278 = ssub.s32 2048, 2048
          %279 = vsyncadd [#allocation6], %s278
          %s280 = sshll.u32 [#allocation7], 4
          %s281 = int_to_ptr.vmem [resolvable:$true] %s280
          %286 = dma.hbm_to_vmem [thread:$0]  %s3, 2048, %s281, [#allocation6], 64, 64, 4
        $region24: #{tpu_custom_call.1} parent=11 // pred_fallthru
          _
        // Predicated region
        $region25: #{tpu_custom_call.1} parent=11 // pred_check
          %p287 = pneg %p133
        $region26: #{tpu_custom_call.1} parent=11 // pred_check_branch
          %289 = sbr.rel (%p287) target = $region28
        $region27: #{tpu_custom_call.1} parent=11 // pred_region
          _
        $region28: #{tpu_custom_call.1} parent=11 // pred_fallthru
          _
        // Predicated region
        $region29: #{tpu_custom_call.1} parent=11 // pred_check
          %p290 = pneg %p154
        $region30: #{tpu_custom_call.1} parent=11 // pred_check_branch
          %292 = sbr.rel (%p290) target = $region32
        $region31: #{tpu_custom_call.1} parent=11 // pred_region
          %s294 = ssub.s32 2048, 2048
          %295 = vsyncadd [#allocation9], %s294
          %s296 = sshll.u32 [#allocation8], 4
          %s297 = int_to_ptr.vmem [resolvable:$true] %s296
          %302 = dma.hbm_to_vmem [thread:$0]  %s5, 2048, %s297, [#allocation9], 128, 128, 8
        $region32: #{tpu_custom_call.1} parent=11 // pred_fallthru
          _
        // Predicated region
        $region33: #{tpu_custom_call.1} parent=11 // pred_check
          %p303 = pneg %p175
        $region34: #{tpu_custom_call.1} parent=11 // pred_check_branch
          %305 = sbr.rel (%p303) target = $region36
        $region35: #{tpu_custom_call.1} parent=11 // pred_region
          _
        $region36: #{tpu_custom_call.1} parent=11 // pred_fallthru
          _
        // Predicated region
        $region37: #{tpu_custom_call.1} parent=11 // pred_check
          %p306 = pneg %p196
        $region38: #{tpu_custom_call.1} parent=11 // pred_check_branch
          %308 = sbr.rel (%p306) target = $region40
        $region39: #{tpu_custom_call.1} parent=11 // pred_region
          %s310 = ssub.s32 2048, 2048
          %311 = vsyncadd [#allocation9], %s310
          %s312 = sshll.u32 [#allocation10], 4
          %s313 = int_to_ptr.vmem [resolvable:$true] %s312
          %318 = dma.hbm_to_vmem [thread:$0]  %s7, 2048, %s313, [#allocation9], 64, 64, 4
        $region40: #{tpu_custom_call.1} parent=11 // pred_fallthru
          _
        // Predicated region
        $region41: #{tpu_custom_call.1} parent=11 // pred_check
          %p319 = pneg %p217
        $region42: #{tpu_custom_call.1} parent=11 // pred_check_branch
          %321 = sbr.rel (%p319) target = $region44
        $region43: #{tpu_custom_call.1} parent=11 // pred_region
          _
        $region44: #{tpu_custom_call.1} parent=11 // pred_fallthru
          _
      $region12: #{tpu_custom_call.1} parent=5 // pred_fallthru
        _
      %p322 = scmp.lt.s32.totalorder %s23, 8
      // Predicated region
      $region45: #{tpu_custom_call.1} parent=5 // pred_check
        %p323 = pneg %p322
      $region46: #{tpu_custom_call.1} parent=5 // pred_check_branch
        %325 = sbr.rel (%p323) target = $region48
      $region47: #{tpu_custom_call.1} parent=5 // pred_region
        // Predicated region
        $region49: #{tpu_custom_call.1} parent=47 // pred_check
          %p326 = pneg %p43
        $region50: #{tpu_custom_call.1} parent=47 // pred_check_branch
          %328 = sbr.rel (%p326) target = $region52
        $region51: #{tpu_custom_call.1} parent=47 // pred_region
          %s329 = sand.u32 %s33, 1
          %s330 = scalar_lea.sflag [#allocation3], %s329
          %s331 = sand.u32 %s33, 1
          %s332 = smul.addr %s331, 256
          %s333 = scalar_lea.vmem [#allocation2], %s332
          %s334 = smul.u32 16, %s23
          %s336 = ssub.s32 4096, 4096
          %337 = vsyncadd %s330, %s336
          %s338 = smul.addr %s334, 2
          %s339 = smul.addr %s338, 128
          %s340 = scalar_lea.hbm %s0, %s339
          %s341 = sshll.u32 %s333, 4
          %s342 = int_to_ptr.vmem [resolvable:$true] %s341
          %347 = dma.hbm_to_vmem [thread:$0]  %s340, 4096, %s342, %s330, 256, 256, 16
        $region52: #{tpu_custom_call.1} parent=47 // pred_fallthru
          _
      $region48: #{tpu_custom_call.1} parent=5 // pred_fallthru
        _
      %p348 = scmp.le.s32.totalorder 1, %s23
      %p349 = scmp.lt.s32.totalorder %s23, 9
      %p350 = pnand %p348, %p349
      %p351 = pneg %p350
      // Predicated region
      $region53: #{tpu_custom_call.1} parent=5 // pred_check
        _
      $region54: #{tpu_custom_call.1} parent=5 // pred_check_branch
        %353 = sbr.rel (%p350) target = $region56
      $region55: #{tpu_custom_call.1} parent=5 // pred_region
        %s354 = ssub.s32 %s23, 1
        %s355 = sand.u32 %s36, 1
        %s356 = scalar_lea.sflag [#allocation3], %s355
        %s357 = sand.u32 %s36, 1
        %s358 = smul.addr %s357, 256
        %s359 = scalar_lea.vmem [#allocation2], %s358
        // Predicated region
        $region57: #{tpu_custom_call.1} parent=55 // pred_check
          %p360 = pneg %p49
        $region58: #{tpu_custom_call.1} parent=55 // pred_check_branch
          %362 = sbr.rel (%p360) target = $region60
        $region59: #{tpu_custom_call.1} parent=55 // pred_region
          %363 = dma.done %s356, 4096
        $region60: #{tpu_custom_call.1} parent=55 // pred_fallthru
          _
        // Predicated region
        $region61: #{tpu_custom_call.1} parent=55 // pred_check
          %p364 = pneg %p70
        $region62: #{tpu_custom_call.1} parent=55 // pred_check_branch
          %366 = sbr.rel (%p364) target = $region64
        $region63: #{tpu_custom_call.1} parent=55 // pred_region
          %367 = dma.done [#allocation6], 2048
        $region64: #{tpu_custom_call.1} parent=55 // pred_fallthru
          _
        // Predicated region
        $region65: #{tpu_custom_call.1} parent=55 // pred_check
          %p368 = pneg %p112
        $region66: #{tpu_custom_call.1} parent=55 // pred_check_branch
          %370 = sbr.rel (%p368) target = $region68
        $region67: #{tpu_custom_call.1} parent=55 // pred_region
          %371 = dma.done [#allocation6], 2048
        $region68: #{tpu_custom_call.1} parent=55 // pred_fallthru
          _
        // Predicated region
        $region69: #{tpu_custom_call.1} parent=55 // pred_check
          %p372 = pneg %p154
        $region70: #{tpu_custom_call.1} parent=55 // pred_check_branch
          %374 = sbr.rel (%p372) target = $region72
        $region71: #{tpu_custom_call.1} parent=55 // pred_region
          %375 = dma.done [#allocation9], 2048
        $region72: #{tpu_custom_call.1} parent=55 // pred_fallthru
          _
        // Predicated region
        $region73: #{tpu_custom_call.1} parent=55 // pred_check
          %p376 = pneg %p196
        $region74: #{tpu_custom_call.1} parent=55 // pred_check_branch
          %378 = sbr.rel (%p376) target = $region76
        $region75: #{tpu_custom_call.1} parent=55 // pred_region
          %379 = dma.done [#allocation9], 2048
        $region76: #{tpu_custom_call.1} parent=55 // pred_fallthru
          _
        %s380 = sand.u32 %s36, 1
        %s381 = scalar_lea.sflag [#allocation3], %s380
        %s382 = sand.u32 %s36, 1
        %s383 = smul.addr %s382, 256
        %s384 = scalar_lea.vmem [#allocation2], %s383
        %p385 = pneg %p49
        %p386 = pneg %p46
        %p387 = pneg %p70
        %p388 = pneg %p67
        %p389 = pneg %p91
        %p390 = pneg %p88
        %p391 = pneg %p112
        %p392 = pneg %p109
        %p393 = pneg %p133
        %p394 = pneg %p130
        %p395 = pneg %p154
        %p396 = pneg %p151
        %p397 = pneg %p175
        %p398 = pneg %p172
        %p399 = pneg %p196
        %p400 = pneg %p193
        %p401 = pneg %p217
        %p402 = pneg %p214
        %p403 = pneg %p243
        %p404 = pneg %p240
        %s405 = sand.u32 %s230, 1
        %s406 = scalar_lea.sflag [#allocation4], %s405
        %s407 = sand.u32 %s230, 1
        %s408 = smul.addr %s407, 256
        %s409 = scalar_lea.vmem [#allocation11], %s408
        %s410 = smul.u32 16, %s28
        %s411 = smul.u32 16, %s28
        %v413 = vld [vmem:[%s359] sm:$0xff]
        %v414 = vld [vmem:[%s359 + $0x10] sm:$0xff]
        %v415 = vld [vmem:[%s359 + $0x20] sm:$0xff]
        %v416 = vld [vmem:[%s359 + $0x30] sm:$0xff]
        %v417 = vld [vmem:[%s359 + $0x40] sm:$0xff]
        %v418 = vld [vmem:[%s359 + $0x50] sm:$0xff]
        %v419 = vld [vmem:[%s359 + $0x60] sm:$0xff]
        %v420 = vld [vmem:[%s359 + $0x70] sm:$0xff]
        %v421 = vld [vmem:[%s359 + $0x80] sm:$0xff]
        %v422 = vld [vmem:[%s359 + $0x90] sm:$0xff]
        %v423 = vld [vmem:[%s359 + $0xa0] sm:$0xff]
        %v424 = vld [vmem:[%s359 + $0xb0] sm:$0xff]
        %v425 = vld [vmem:[%s359 + $0xc0] sm:$0xff]
        %v426 = vld [vmem:[%s359 + $0xd0] sm:$0xff]
        %v427 = vld [vmem:[%s359 + $0xe0] sm:$0xff]
        %v428 = vld [vmem:[%s359 + $0xf0] sm:$0xff]
        %v429 = vld [vmem:[%s359 + $0x8] sm:$0xff]
        %v430 = vld [vmem:[%s359 + $0x18] sm:$0xff]
        %v431 = vld [vmem:[%s359 + $0x28] sm:$0xff]
        %v432 = vld [vmem:[%s359 + $0x38] sm:$0xff]
        %v433 = vld [vmem:[%s359 + $0x48] sm:$0xff]
        %v434 = vld [vmem:[%s359 + $0x58] sm:$0xff]
        %v435 = vld [vmem:[%s359 + $0x68] sm:$0xff]
        %v436 = vld [vmem:[%s359 + $0x78] sm:$0xff]
        %v437 = vld [vmem:[%s359 + $0x88] sm:$0xff]
        %v438 = vld [vmem:[%s359 + $0x98] sm:$0xff]
        %v439 = vld [vmem:[%s359 + $0xa8] sm:$0xff]
        %v440 = vld [vmem:[%s359 + $0xb8] sm:$0xff]
        %v441 = vld [vmem:[%s359 + $0xc8] sm:$0xff]
        %v442 = vld [vmem:[%s359 + $0xd8] sm:$0xff]
        %v443 = vld [vmem:[%s359 + $0xe8] sm:$0xff]
        %v444 = vld [vmem:[%s359 + $0xf8] sm:$0xff]
        %v445 = vpack.c.bf16 %v430, %v429
        %v446 = vpack.c.bf16 %v432, %v431
        %v447 = vpack.c.bf16 %v434, %v433
        %v448 = vpack.c.bf16 %v436, %v435
        %v449 = vpack.c.bf16 %v438, %v437
        %v450 = vpack.c.bf16 %v440, %v439
        %v451 = vpack.c.bf16 %v442, %v441
        %v452 = vpack.c.bf16 %v444, %v443
        %v453 = vld [vmem:[#allocation5] sm:$0xff]
        %v454 = vld [vmem:[#allocation5 + $0x8] sm:$0xff]
        %v455 = vld [vmem:[#allocation5 + $0x10] sm:$0xff]
        %v456 = vld [vmem:[#allocation5 + $0x18] sm:$0xff]
        %v457 = vld [vmem:[#allocation5 + $0x20] sm:$0xff]
        %v458 = vld [vmem:[#allocation5 + $0x28] sm:$0xff]
        %v459 = vld [vmem:[#allocation5 + $0x30] sm:$0xff]
        %v460 = vld [vmem:[#allocation5 + $0x38] sm:$0xff]
        %v461 = vld [vmem:[#allocation5 + $0x40] sm:$0xff]
        %v462 = vld [vmem:[#allocation5 + $0x48] sm:$0xff]
        %v463 = vld [vmem:[#allocation5 + $0x50] sm:$0xff]
        %v464 = vld [vmem:[#allocation5 + $0x58] sm:$0xff]
        %v465 = vld [vmem:[#allocation5 + $0x60] sm:$0xff]
        %v466 = vld [vmem:[#allocation5 + $0x68] sm:$0xff]
        %v467 = vld [vmem:[#allocation5 + $0x70] sm:$0xff]
        %v468 = vld [vmem:[#allocation5 + $0x78] sm:$0xff]
        %v469 = vld [vmem:[%s2] sm:$0x3]
        %v471 = vlaneseq
        %v472 = vshrl.u32 %v471, 7
        %v473 = vsub.s32 0, %v472
        %v474 = vrot.slane %v469, %v473
        %v475 = vlaneseq
        %v476 = vshrl.u32 %v475, 7
        %v477 = vsub.s32 1, %v476
        %v478 = vrot.slane %v469, %v477
        %v497 = vunpack.c.l.b16 %v453
        %v498 = vunpack.c.h.b16 %v453
        %v499 = vunpack.c.l.b16 %v454
        %v500 = vunpack.c.h.b16 %v454
        %v501 = vunpack.c.l.b16 %v455
        %v502 = vunpack.c.h.b16 %v455
        %v503 = vunpack.c.l.b16 %v456
        %v504 = vunpack.c.h.b16 %v456
        %v505 = vunpack.c.l.b16 %v457
        %v506 = vunpack.c.h.b16 %v457
        %v507 = vunpack.c.l.b16 %v458
        %v508 = vunpack.c.h.b16 %v458
        %v509 = vunpack.c.l.b16 %v459
        %v510 = vunpack.c.h.b16 %v459
        %v511 = vunpack.c.l.b16 %v460
        %v512 = vunpack.c.h.b16 %v460
        %v513 = vunpack.c.l.b16 %v461
        %v514 = vunpack.c.h.b16 %v461
        %v515 = vunpack.c.l.b16 %v462
        %v516 = vunpack.c.h.b16 %v462
        %v517 = vunpack.c.l.b16 %v463
        %v518 = vunpack.c.h.b16 %v463
        %v519 = vunpack.c.l.b16 %v464
        %v520 = vunpack.c.h.b16 %v464
        %v521 = vunpack.c.l.b16 %v465
        %v522 = vunpack.c.h.b16 %v465
        %v523 = vunpack.c.l.b16 %v466
        %v524 = vunpack.c.h.b16 %v466
        %v525 = vunpack.c.l.b16 %v467
        %v526 = vunpack.c.h.b16 %v467
        %v527 = vunpack.c.l.b16 %v468
        %v528 = vunpack.c.h.b16 %v468
        %v529 = vpack.c.b16 %v499, %v497
        %v530 = vpack.c.b16 %v500, %v498
        %v531 = vpack.c.b16 %v503, %v501
        %v532 = vpack.c.b16 %v504, %v502
        %v533 = vpack.c.b16 %v507, %v505
        %v534 = vpack.c.b16 %v508, %v506
        %v535 = vpack.c.b16 %v511, %v509
        %v536 = vpack.c.b16 %v512, %v510
        %v537 = vpack.c.b16 %v515, %v513
        %v538 = vpack.c.b16 %v516, %v514
        %v539 = vpack.c.b16 %v519, %v517
        %v540 = vpack.c.b16 %v520, %v518
        %v541 = vpack.c.b16 %v523, %v521
        %v542 = vpack.c.b16 %v524, %v522
        %v543 = vpack.c.b16 %v527, %v525
        %v544 = vpack.c.b16 %v528, %v526
        %561 = vmatprep.subr.bf16.mxu0 %v544
        %562 = vmatpush1.bf16.msra.mxu0 %v543
        %563 = vmatprep.subr.bf16.mxu0 %v542
        %564 = vmatpush1.bf16.msra.mxu0 %v541
        %565 = vmatprep.subr.bf16.mxu0 %v540
        %566 = vmatpush1.bf16.msra.mxu0 %v539
        %567 = vmatprep.subr.bf16.mxu0 %v538
        %568 = vmatpush1.bf16.msra.mxu0 %v537
        %569 = vmatprep.subr.bf16.mxu0 %v536
        %570 = vmatpush1.bf16.msra.mxu0 %v535
        %571 = vmatprep.subr.bf16.mxu0 %v534
        %572 = vmatpush1.bf16.msra.mxu0 %v533
        %573 = vmatprep.subr.bf16.mxu0 %v532
        %574 = vmatpush1.bf16.msra.mxu0 %v531
        %575 = vmatprep.subr.bf16.mxu0 %v530
        %576 = vmatpush1.bf16.msra.mxu0 %v529
        %577 = vmatprep.subr.bf16.mxu0 0
        %578 = vmatpush2.bf16.msra.mxu0 0
        %579 = vmatprep.subr.bf16.mxu0 0
        %580 = vmatpush2.bf16.msra.mxu0 0
        %581 = vmatprep.subr.bf16.mxu0 0
        %582 = vmatpush2.bf16.msra.mxu0 0
        %583 = vmatprep.subr.bf16.mxu0 0
        %584 = vmatpush2.bf16.msra.mxu0 0
        %585 = vmatprep.subr.bf16.mxu0 0
        %586 = vmatpush2.bf16.msra.mxu0 0
        %587 = vmatprep.subr.bf16.mxu0 0
        %588 = vmatpush2.bf16.msra.mxu0 0
        %589 = vmatprep.subr.bf16.mxu0 0
        %590 = vmatpush2.bf16.msra.mxu0 0
        %591 = vmatprep.subr.bf16.mxu0 0
        %592 = vmatpush2.bf16.msra.mxu0 0
        %593 = vmatprep.mubr.bf16.mxu0 0
        %594 = vmatmul.mubr.bf16.gmra.mxu0 %v445
        %v595 = vpop.f32.mrf.mxu0
        %v596 = vadd.f32 %v474, %v595
        %v597 = vpop.f32.mrf.mxu0
        %v598 = vadd.f32 %v478, %v597
        %v599 = vpop.f32.mrf.mxu0
        %v600 = vadd.f32 %v474, %v599
        %v601 = vpop.f32.mrf.mxu0
        %v602 = vadd.f32 %v478, %v601
        %603 = vmatprep.mubr.bf16.mxu0 0
        %604 = vmatmul.mubr.bf16.gmra.mxu0 %v446
        %v605 = vpop.f32.mrf.mxu0
        %v606 = vadd.f32 %v474, %v605
        %v607 = vpop.f32.mrf.mxu0
        %v608 = vadd.f32 %v478, %v607
        %v609 = vpop.f32.mrf.mxu0
        %v610 = vadd.f32 %v474, %v609
        %v611 = vpop.f32.mrf.mxu0
        %v612 = vadd.f32 %v478, %v611
        %613 = vmatprep.mubr.bf16.mxu0 0
        %614 = vmatmul.mubr.bf16.gmra.mxu0 %v447
        %v615 = vpop.f32.mrf.mxu0
        %v616 = vadd.f32 %v474, %v615
        %v617 = vpop.f32.mrf.mxu0
        %v618 = vadd.f32 %v478, %v617
        %v619 = vpop.f32.mrf.mxu0
        %v620 = vadd.f32 %v474, %v619
        %v621 = vpop.f32.mrf.mxu0
        %v622 = vadd.f32 %v478, %v621
        %623 = vmatprep.mubr.bf16.mxu0 0
        %624 = vmatmul.mubr.bf16.gmra.mxu0 %v448
        %v625 = vpop.f32.mrf.mxu0
        %v626 = vadd.f32 %v474, %v625
        %v627 = vpop.f32.mrf.mxu0
        %v628 = vadd.f32 %v478, %v627
        %v629 = vpop.f32.mrf.mxu0
        %v630 = vadd.f32 %v474, %v629
        %v631 = vpop.f32.mrf.mxu0
        %v632 = vadd.f32 %v478, %v631
        %633 = vmatprep.mubr.bf16.mxu0 0
        %634 = vmatmul.mubr.bf16.gmra.mxu0 %v449
        %v635 = vpop.f32.mrf.mxu0
        %v636 = vadd.f32 %v474, %v635
        %v637 = vpop.f32.mrf.mxu0
        %v638 = vadd.f32 %v478, %v637
        %v639 = vpop.f32.mrf.mxu0
        %v640 = vadd.f32 %v474, %v639
        %v641 = vpop.f32.mrf.mxu0
        %v642 = vadd.f32 %v478, %v641
        %643 = vmatprep.mubr.bf16.mxu0 0
        %644 = vmatmul.mubr.bf16.gmra.mxu0 %v450
        %v645 = vpop.f32.mrf.mxu0
        %v646 = vadd.f32 %v474, %v645
        %v647 = vpop.f32.mrf.mxu0
        %v648 = vadd.f32 %v478, %v647
        %v649 = vpop.f32.mrf.mxu0
        %v650 = vadd.f32 %v474, %v649
        %v651 = vpop.f32.mrf.mxu0
        %v652 = vadd.f32 %v478, %v651
        %653 = vmatprep.mubr.bf16.mxu0 0
        %654 = vmatmul.mubr.bf16.gmra.mxu0 %v451
        %v655 = vpop.f32.mrf.mxu0
        %v656 = vadd.f32 %v474, %v655
        %v657 = vpop.f32.mrf.mxu0
        %v658 = vadd.f32 %v478, %v657
        %v659 = vpop.f32.mrf.mxu0
        %v660 = vadd.f32 %v474, %v659
        %v661 = vpop.f32.mrf.mxu0
        %v662 = vadd.f32 %v478, %v661
        %663 = vmatprep.mubr.bf16.mxu0 0
        %664 = vmatmul.mubr.bf16.gmra.mxu0 %v452
        %v665 = vpop.f32.mrf.mxu0
        %v666 = vadd.f32 %v474, %v665
        %v667 = vpop.f32.mrf.mxu0
        %v668 = vadd.f32 %v478, %v667
        %v669 = vpop.f32.mrf.mxu0
        %v670 = vadd.f32 %v474, %v669
        %v671 = vpop.f32.mrf.mxu0
        %v672 = vadd.f32 %v478, %v671
        %673 = vdwg.mxu0
        %v674 = vmul.f32 %v596, %v596
        %v675 = vmul.f32 %v598, %v598
        %v676 = vmul.f32 %v600, %v600
        %v677 = vmul.f32 %v602, %v602
        %v678 = vmul.f32 %v606, %v606
        %v679 = vmul.f32 %v608, %v608
        %v680 = vmul.f32 %v610, %v610
        %v681 = vmul.f32 %v612, %v612
        %v682 = vmul.f32 %v616, %v616
        %v683 = vmul.f32 %v618, %v618
        %v684 = vmul.f32 %v620, %v620
        %v685 = vmul.f32 %v622, %v622
        %v686 = vmul.f32 %v626, %v626
        %v687 = vmul.f32 %v628, %v628
        %v688 = vmul.f32 %v630, %v630
        %v689 = vmul.f32 %v632, %v632
        %v690 = vmul.f32 %v636, %v636
        %v691 = vmul.f32 %v638, %v638
        %v692 = vmul.f32 %v640, %v640
        %v693 = vmul.f32 %v642, %v642
        %v694 = vmul.f32 %v646, %v646
        %v695 = vmul.f32 %v648, %v648
        %v696 = vmul.f32 %v650, %v650
        %v697 = vmul.f32 %v652, %v652
        %v698 = vmul.f32 %v656, %v656
        %v699 = vmul.f32 %v658, %v658
        %v700 = vmul.f32 %v660, %v660
        %v701 = vmul.f32 %v662, %v662
        %v702 = vmul.f32 %v666, %v666
        %v703 = vmul.f32 %v668, %v668
        %v704 = vmul.f32 %v670, %v670
        %v705 = vmul.f32 %v672, %v672
        %v706 = vmul.f32 %v596, %v674
        %v707 = vmul.f32 %v598, %v675
        %v708 = vmul.f32 %v600, %v676
        %v709 = vmul.f32 %v602, %v677
        %v710 = vmul.f32 %v606, %v678
        %v711 = vmul.f32 %v608, %v679
        %v712 = vmul.f32 %v610, %v680
        %v713 = vmul.f32 %v612, %v681
        %v714 = vmul.f32 %v616, %v682
        %v715 = vmul.f32 %v618, %v683
        %v716 = vmul.f32 %v620, %v684
        %v717 = vmul.f32 %v622, %v685
        %v718 = vmul.f32 %v626, %v686
        %v719 = vmul.f32 %v628, %v687
        %v720 = vmul.f32 %v630, %v688
        %v721 = vmul.f32 %v632, %v689
        %v722 = vmul.f32 %v636, %v690
        %v723 = vmul.f32 %v638, %v691
        %v724 = vmul.f32 %v640, %v692
        %v725 = vmul.f32 %v642, %v693
        %v726 = vmul.f32 %v646, %v694
        %v727 = vmul.f32 %v648, %v695
        %v728 = vmul.f32 %v650, %v696
        %v729 = vmul.f32 %v652, %v697
        %v730 = vmul.f32 %v656, %v698
        %v731 = vmul.f32 %v658, %v699
        %v732 = vmul.f32 %v660, %v700
        %v733 = vmul.f32 %v662, %v701
        %v734 = vmul.f32 %v666, %v702
        %v735 = vmul.f32 %v668, %v703
        %v736 = vmul.f32 %v670, %v704
        %v737 = vmul.f32 %v672, %v705
        %v738 = vmul.f32 %v706, 0.044715
        %v739 = vmul.f32 %v707, 0.044715
        %v740 = vmul.f32 %v708, 0.044715
        %v741 = vmul.f32 %v709, 0.044715
        %v742 = vmul.f32 %v710, 0.044715
        %v743 = vmul.f32 %v711, 0.044715
        %v744 = vmul.f32 %v712, 0.044715
        %v745 = vmul.f32 %v713, 0.044715
        %v746 = vmul.f32 %v714, 0.044715
        %v747 = vmul.f32 %v715, 0.044715
        %v748 = vmul.f32 %v716, 0.044715
        %v749 = vmul.f32 %v717, 0.044715
        %v750 = vmul.f32 %v718, 0.044715
        %v751 = vmul.f32 %v719, 0.044715
        %v752 = vmul.f32 %v720, 0.044715
        %v753 = vmul.f32 %v721, 0.044715
        %v754 = vmul.f32 %v722, 0.044715
        %v755 = vmul.f32 %v723, 0.044715
        %v756 = vmul.f32 %v724, 0.044715
        %v757 = vmul.f32 %v725, 0.044715
        %v758 = vmul.f32 %v726, 0.044715
        %v759 = vmul.f32 %v727, 0.044715
        %v760 = vmul.f32 %v728, 0.044715
        %v761 = vmul.f32 %v729, 0.044715
        %v762 = vmul.f32 %v730, 0.044715
        %v763 = vmul.f32 %v731, 0.044715
        %v764 = vmul.f32 %v732, 0.044715
        %v765 = vmul.f32 %v733, 0.044715
        %v766 = vmul.f32 %v734, 0.044715
        %v767 = vmul.f32 %v735, 0.044715
        %v768 = vmul.f32 %v736, 0.044715
        %v769 = vmul.f32 %v737, 0.044715
        %v770 = vadd.f32 %v596, %v738
        %v771 = vadd.f32 %v598, %v739
        %v772 = vadd.f32 %v600, %v740
        %v773 = vadd.f32 %v602, %v741
        %v774 = vadd.f32 %v606, %v742
        %v775 = vadd.f32 %v608, %v743
        %v776 = vadd.f32 %v610, %v744
        %v777 = vadd.f32 %v612, %v745
        %v778 = vadd.f32 %v616, %v746
        %v779 = vadd.f32 %v618, %v747
        %v780 = vadd.f32 %v620, %v748
        %v781 = vadd.f32 %v622, %v749
        %v782 = vadd.f32 %v626, %v750
        %v783 = vadd.f32 %v628, %v751
        %v784 = vadd.f32 %v630, %v752
        %v785 = vadd.f32 %v632, %v753
        %v786 = vadd.f32 %v636, %v754
        %v787 = vadd.f32 %v638, %v755
        %v788 = vadd.f32 %v640, %v756
        %v789 = vadd.f32 %v642, %v757
        %v790 = vadd.f32 %v646, %v758
        %v791 = vadd.f32 %v648, %v759
        %v792 = vadd.f32 %v650, %v760
        %v793 = vadd.f32 %v652, %v761
        %v794 = vadd.f32 %v656, %v762
        %v795 = vadd.f32 %v658, %v763
        %v796 = vadd.f32 %v660, %v764
        %v797 = vadd.f32 %v662, %v765
        %v798 = vadd.f32 %v666, %v766
        %v799 = vadd.f32 %v668, %v767
        %v800 = vadd.f32 %v670, %v768
        %v801 = vadd.f32 %v672, %v769
        %v802 = vmul.f32 %v770, 0.7978846
        %v803 = vmul.f32 %v771, 0.7978846
        %v804 = vmul.f32 %v772, 0.7978846
        %v805 = vmul.f32 %v773, 0.7978846
        %v806 = vmul.f32 %v774, 0.7978846
        %v807 = vmul.f32 %v775, 0.7978846
        %v808 = vmul.f32 %v776, 0.7978846
        %v809 = vmul.f32 %v777, 0.7978846
        %v810 = vmul.f32 %v778, 0.7978846
        %v811 = vmul.f32 %v779, 0.7978846
        %v812 = vmul.f32 %v780, 0.7978846
        %v813 = vmul.f32 %v781, 0.7978846
        %v814 = vmul.f32 %v782, 0.7978846
        %v815 = vmul.f32 %v783, 0.7978846
        %v816 = vmul.f32 %v784, 0.7978846
        %v817 = vmul.f32 %v785, 0.7978846
        %v818 = vmul.f32 %v786, 0.7978846
        %v819 = vmul.f32 %v787, 0.7978846
        %v820 = vmul.f32 %v788, 0.7978846
        %v821 = vmul.f32 %v789, 0.7978846
        %v822 = vmul.f32 %v790, 0.7978846
        %v823 = vmul.f32 %v791, 0.7978846
        %v824 = vmul.f32 %v792, 0.7978846
        %v825 = vmul.f32 %v793, 0.7978846
        %v826 = vmul.f32 %v794, 0.7978846
        %v827 = vmul.f32 %v795, 0.7978846
        %v828 = vmul.f32 %v796, 0.7978846
        %v829 = vmul.f32 %v797, 0.7978846
        %v830 = vmul.f32 %v798, 0.7978846
        %v831 = vmul.f32 %v799, 0.7978846
        %v832 = vmul.f32 %v800, 0.7978846
        %v833 = vmul.f32 %v801, 0.7978846
        %v834 = vtanh.pop %v802
        %v835 = vtanh.pop %v803
        %v836 = vtanh.pop %v804
        %v837 = vtanh.pop %v805
        %v838 = vtanh.pop %v806
        %v839 = vtanh.pop %v807
        %v840 = vtanh.pop %v808
        %v841 = vtanh.pop %v809
        %v842 = vtanh.pop %v810
        %v843 = vtanh.pop %v811
        %v844 = vtanh.pop %v812
        %v845 = vtanh.pop %v813
        %v846 = vtanh.pop %v814
        %v847 = vtanh.pop %v815
        %v848 = vtanh.pop %v816
        %v849 = vtanh.pop %v817
        %v850 = vtanh.pop %v818
        %v851 = vtanh.pop %v819
        %v852 = vtanh.pop %v820
        %v853 = vtanh.pop %v821
        %v854 = vtanh.pop %v822
        %v855 = vtanh.pop %v823
        %v856 = vtanh.pop %v824
        %v857 = vtanh.pop %v825
        %v858 = vtanh.pop %v826
        %v859 = vtanh.pop %v827
        %v860 = vtanh.pop %v828
        %v861 = vtanh.pop %v829
        %v862 = vtanh.pop %v830
        %v863 = vtanh.pop %v831
        %v864 = vtanh.pop %v832
        %v865 = vtanh.pop %v833
        %v866 = vadd.f32 %v834, 1.0
        %v867 = vadd.f32 %v835, 1.0
        %v868 = vadd.f32 %v836, 1.0
        %v869 = vadd.f32 %v837, 1.0
        %v870 = vadd.f32 %v838, 1.0
        %v871 = vadd.f32 %v839, 1.0
        %v872 = vadd.f32 %v840, 1.0
        %v873 = vadd.f32 %v841, 1.0
        %v874 = vadd.f32 %v842, 1.0
        %v875 = vadd.f32 %v843, 1.0
        %v876 = vadd.f32 %v844, 1.0
        %v877 = vadd.f32 %v845, 1.0
        %v878 = vadd.f32 %v846, 1.0
        %v879 = vadd.f32 %v847, 1.0
        %v880 = vadd.f32 %v848, 1.0
        %v881 = vadd.f32 %v849, 1.0
        %v882 = vadd.f32 %v850, 1.0
        %v883 = vadd.f32 %v851, 1.0
        %v884 = vadd.f32 %v852, 1.0
        %v885 = vadd.f32 %v853, 1.0
        %v886 = vadd.f32 %v854, 1.0
        %v887 = vadd.f32 %v855, 1.0
        %v888 = vadd.f32 %v856, 1.0
        %v889 = vadd.f32 %v857, 1.0
        %v890 = vadd.f32 %v858, 1.0
        %v891 = vadd.f32 %v859, 1.0
        %v892 = vadd.f32 %v860, 1.0
        %v893 = vadd.f32 %v861, 1.0
        %v894 = vadd.f32 %v862, 1.0
        %v895 = vadd.f32 %v863, 1.0
        %v896 = vadd.f32 %v864, 1.0
        %v897 = vadd.f32 %v865, 1.0
        %v898 = vmul.f32 %v866, 0.5
        %v899 = vmul.f32 %v867, 0.5
        %v900 = vmul.f32 %v868, 0.5
        %v901 = vmul.f32 %v869, 0.5
        %v902 = vmul.f32 %v870, 0.5
        %v903 = vmul.f32 %v871, 0.5
        %v904 = vmul.f32 %v872, 0.5
        %v905 = vmul.f32 %v873, 0.5
        %v906 = vmul.f32 %v874, 0.5
        %v907 = vmul.f32 %v875, 0.5
        %v908 = vmul.f32 %v876, 0.5
        %v909 = vmul.f32 %v877, 0.5
        %v910 = vmul.f32 %v878, 0.5
        %v911 = vmul.f32 %v879, 0.5
        %v912 = vmul.f32 %v880, 0.5
        %v913 = vmul.f32 %v881, 0.5
        %v914 = vmul.f32 %v882, 0.5
        %v915 = vmul.f32 %v883, 0.5
        %v916 = vmul.f32 %v884, 0.5
        %v917 = vmul.f32 %v885, 0.5
        %v918 = vmul.f32 %v886, 0.5
        %v919 = vmul.f32 %v887, 0.5
        %v920 = vmul.f32 %v888, 0.5
        %v921 = vmul.f32 %v889, 0.5
        %v922 = vmul.f32 %v890, 0.5
        %v923 = vmul.f32 %v891, 0.5
        %v924 = vmul.f32 %v892, 0.5
        %v925 = vmul.f32 %v893, 0.5
        %v926 = vmul.f32 %v894, 0.5
        %v927 = vmul.f32 %v895, 0.5
        %v928 = vmul.f32 %v896, 0.5
        %v929 = vmul.f32 %v897, 0.5
        %v930 = vmul.f32 %v596, %v898
        %v931 = vmul.f32 %v598, %v899
        %v932 = vmul.f32 %v600, %v900
        %v933 = vmul.f32 %v602, %v901
        %v934 = vmul.f32 %v606, %v902
        %v935 = vmul.f32 %v608, %v903
        %v936 = vmul.f32 %v610, %v904
        %v937 = vmul.f32 %v612, %v905
        %v938 = vmul.f32 %v616, %v906
        %v939 = vmul.f32 %v618, %v907
        %v940 = vmul.f32 %v620, %v908
        %v941 = vmul.f32 %v622, %v909
        %v942 = vmul.f32 %v626, %v910
        %v943 = vmul.f32 %v628, %v911
        %v944 = vmul.f32 %v630, %v912
        %v945 = vmul.f32 %v632, %v913
        %v946 = vmul.f32 %v636, %v914
        %v947 = vmul.f32 %v638, %v915
        %v948 = vmul.f32 %v640, %v916
        %v949 = vmul.f32 %v642, %v917
        %v950 = vmul.f32 %v646, %v918
        %v951 = vmul.f32 %v648, %v919
        %v952 = vmul.f32 %v650, %v920
        %v953 = vmul.f32 %v652, %v921
        %v954 = vmul.f32 %v656, %v922
        %v955 = vmul.f32 %v658, %v923
        %v956 = vmul.f32 %v660, %v924
        %v957 = vmul.f32 %v662, %v925
        %v958 = vmul.f32 %v666, %v926
        %v959 = vmul.f32 %v668, %v927
        %v960 = vmul.f32 %v670, %v928
        %v961 = vmul.f32 %v672, %v929
        %v962 = vpack.c.bf16 %v932, %v930
        %v963 = vpack.c.bf16 %v933, %v931
        %v964 = vpack.c.bf16 %v936, %v934
        %v965 = vpack.c.bf16 %v937, %v935
        %v966 = vpack.c.bf16 %v940, %v938
        %v967 = vpack.c.bf16 %v941, %v939
        %v968 = vpack.c.bf16 %v944, %v942
        %v969 = vpack.c.bf16 %v945, %v943
        %v970 = vpack.c.bf16 %v948, %v946
        %v971 = vpack.c.bf16 %v949, %v947
        %v972 = vpack.c.bf16 %v952, %v950
        %v973 = vpack.c.bf16 %v953, %v951
        %v974 = vpack.c.bf16 %v956, %v954
        %v975 = vpack.c.bf16 %v957, %v955
        %v976 = vpack.c.bf16 %v960, %v958
        %v977 = vpack.c.bf16 %v961, %v959
        %v978 = vld [vmem:[#allocation7] sm:$0xf]
        %v979 = vld [vmem:[#allocation7 + $0x4] sm:$0xf]
        %v980 = vld [vmem:[#allocation7 + $0x8] sm:$0xf]
        %v981 = vld [vmem:[#allocation7 + $0xc] sm:$0xf]
        %v982 = vld [vmem:[#allocation7 + $0x10] sm:$0xf]
        %v983 = vld [vmem:[#allocation7 + $0x14] sm:$0xf]
        %v984 = vld [vmem:[#allocation7 + $0x18] sm:$0xf]
        %v985 = vld [vmem:[#allocation7 + $0x1c] sm:$0xf]
        %v986 = vld [vmem:[#allocation7 + $0x20] sm:$0xf]
        %v987 = vld [vmem:[#allocation7 + $0x24] sm:$0xf]
        %v988 = vld [vmem:[#allocation7 + $0x28] sm:$0xf]
        %v989 = vld [vmem:[#allocation7 + $0x2c] sm:$0xf]
        %v990 = vld [vmem:[#allocation7 + $0x30] sm:$0xf]
        %v991 = vld [vmem:[#allocation7 + $0x34] sm:$0xf]
        %v992 = vld [vmem:[#allocation7 + $0x38] sm:$0xf]
        %v993 = vld [vmem:[#allocation7 + $0x3c] sm:$0xf]
        %v994 = vld [vmem:[#allocation7 + $0x40] sm:$0xf]
        %v995 = vld [vmem:[#allocation7 + $0x44] sm:$0xf]
        %v996 = vld [vmem:[#allocation7 + $0x48] sm:$0xf]
        %v997 = vld [vmem:[#allocation7 + $0x4c] sm:$0xf]
        %v998 = vld [vmem:[#allocation7 + $0x50] sm:$0xf]
        %v999 = vld [vmem:[#allocation7 + $0x54] sm:$0xf]
        %v1000 = vld [vmem:[#allocation7 + $0x58] sm:$0xf]
        %v1001 = vld [vmem:[#allocation7 + $0x5c] sm:$0xf]
        %v1002 = vld [vmem:[#allocation7 + $0x60] sm:$0xf]
        %v1003 = vld [vmem:[#allocation7 + $0x64] sm:$0xf]
        %v1004 = vld [vmem:[#allocation7 + $0x68] sm:$0xf]
        %v1005 = vld [vmem:[#allocation7 + $0x6c] sm:$0xf]
        %v1006 = vld [vmem:[#allocation7 + $0x70] sm:$0xf]
        %v1007 = vld [vmem:[#allocation7 + $0x74] sm:$0xf]
        %v1008 = vld [vmem:[#allocation7 + $0x78] sm:$0xf]
        %v1009 = vld [vmem:[#allocation7 + $0x7c] sm:$0xf]
        %v1010 = vld [vmem:[%s4] sm:$0x1]
        %v1012 = vlaneseq
        %v1013 = vshrl.u32 %v1012, 7
        %v1014 = vsub.s32 0, %v1013
        %v1015 = vrot.slane %v1010, %v1014
        %v1049 = vunpack.c.l.b16 %v978
        %v1050 = vunpack.c.l.b16 %v979
        %v1051 = vunpack.c.l.b16 %v980
        %v1052 = vunpack.c.l.b16 %v981
        %v1053 = vunpack.c.l.b16 %v982
        %v1054 = vunpack.c.l.b16 %v983
        %v1055 = vunpack.c.l.b16 %v984
        %v1056 = vunpack.c.l.b16 %v985
        %v1057 = vunpack.c.l.b16 %v986
        %v1058 = vunpack.c.l.b16 %v987
        %v1059 = vunpack.c.l.b16 %v988
        %v1060 = vunpack.c.l.b16 %v989
        %v1061 = vunpack.c.l.b16 %v990
        %v1062 = vunpack.c.l.b16 %v991
        %v1063 = vunpack.c.l.b16 %v992
        %v1064 = vunpack.c.l.b16 %v993
        %v1065 = vunpack.c.l.b16 %v994
        %v1066 = vunpack.c.l.b16 %v995
        %v1067 = vunpack.c.l.b16 %v996
        %v1068 = vunpack.c.l.b16 %v997
        %v1069 = vunpack.c.l.b16 %v998
        %v1070 = vunpack.c.l.b16 %v999
        %v1071 = vunpack.c.l.b16 %v1000
        %v1072 = vunpack.c.l.b16 %v1001
        %v1073 = vunpack.c.l.b16 %v1002
        %v1074 = vunpack.c.l.b16 %v1003
        %v1075 = vunpack.c.l.b16 %v1004
        %v1076 = vunpack.c.l.b16 %v1005
        %v1077 = vunpack.c.l.b16 %v1006
        %v1078 = vunpack.c.l.b16 %v1007
        %v1079 = vunpack.c.l.b16 %v1008
        %v1080 = vunpack.c.l.b16 %v1009
        %v1081 = vpack.c.b16 %v1050, %v1049
        %v1082 = vpack.c.b16 %v1052, %v1051
        %v1083 = vpack.c.b16 %v1054, %v1053
        %v1084 = vpack.c.b16 %v1056, %v1055
        %v1085 = vpack.c.b16 %v1058, %v1057
        %v1086 = vpack.c.b16 %v1060, %v1059
        %v1087 = vpack.c.b16 %v1062, %v1061
        %v1088 = vpack.c.b16 %v1064, %v1063
        %v1089 = vpack.c.b16 %v1066, %v1065
        %v1090 = vpack.c.b16 %v1068, %v1067
        %v1091 = vpack.c.b16 %v1070, %v1069
        %v1092 = vpack.c.b16 %v1072, %v1071
        %v1093 = vpack.c.b16 %v1074, %v1073
        %v1094 = vpack.c.b16 %v1076, %v1075
        %v1095 = vpack.c.b16 %v1078, %v1077
        %v1096 = vpack.c.b16 %v1080, %v1079
        %1113 = vmatprep.subr.bf16.mxu0 0
        %1114 = vmatpush1.bf16.msra.mxu0 %v1088
        %1115 = vmatprep.subr.bf16.mxu0 0
        %1116 = vmatpush1.bf16.msra.mxu0 %v1087
        %1117 = vmatprep.subr.bf16.mxu0 0
        %1118 = vmatpush1.bf16.msra.mxu0 %v1086
        %1119 = vmatprep.subr.bf16.mxu0 0
        %1120 = vmatpush1.bf16.msra.mxu0 %v1085
        %1121 = vmatprep.subr.bf16.mxu0 0
        %1122 = vmatpush1.bf16.msra.mxu0 %v1084
        %1123 = vmatprep.subr.bf16.mxu0 0
        %1124 = vmatpush1.bf16.msra.mxu0 %v1083
        %1125 = vmatprep.subr.bf16.mxu0 0
        %1126 = vmatpush1.bf16.msra.mxu0 %v1082
        %1127 = vmatprep.subr.bf16.mxu0 0
        %1128 = vmatpush1.bf16.msra.mxu0 %v1081
        %1129 = vmatprep.subr.bf16.mxu0 0
        %1130 = vmatpush2.bf16.msra.mxu0 %v1096
        %1131 = vmatprep.subr.bf16.mxu0 0
        %1132 = vmatpush2.bf16.msra.mxu0 %v1095
        %1133 = vmatprep.subr.bf16.mxu0 0
        %1134 = vmatpush2.bf16.msra.mxu0 %v1094
        %1135 = vmatprep.subr.bf16.mxu0 0
        %1136 = vmatpush2.bf16.msra.mxu0 %v1093
        %1137 = vmatprep.subr.bf16.mxu0 0
        %1138 = vmatpush2.bf16.msra.mxu0 %v1092
        %1139 = vmatprep.subr.bf16.mxu0 0
        %1140 = vmatpush2.bf16.msra.mxu0 %v1091
        %1141 = vmatprep.subr.bf16.mxu0 0
        %1142 = vmatpush2.bf16.msra.mxu0 %v1090
        %1143 = vmatprep.subr.bf16.mxu0 0
        %1144 = vmatpush2.bf16.msra.mxu0 %v1089
        %1145 = vmatprep.mubr.bf16.mxu0 %v963
        %1146 = vmatmul.mubr.bf16.gmra.mxu0 %v962
        %v1147 = vpop.f32.mrf.mxu0
        %v1148 = vadd.f32 %v1015, %v1147
        %v1149 = vpop.f32.mrf.mxu0
        %v1150 = vpop.f32.mrf.mxu0
        %v1151 = vadd.f32 %v1015, %v1150
        %v1152 = vpop.f32.mrf.mxu0
        %1153 = vmatprep.mubr.bf16.mxu0 %v965
        %1154 = vmatmul.mubr.bf16.gmra.mxu0 %v964
        %v1155 = vpop.f32.mrf.mxu0
        %v1156 = vadd.f32 %v1015, %v1155
        %v1157 = vpop.f32.mrf.mxu0
        %v1158 = vpop.f32.mrf.mxu0
        %v1159 = vadd.f32 %v1015, %v1158
        %v1160 = vpop.f32.mrf.mxu0
        %1161 = vmatprep.mubr.bf16.mxu0 %v967
        %1162 = vmatmul.mubr.bf16.gmra.mxu0 %v966
        %v1163 = vpop.f32.mrf.mxu0
        %v1164 = vadd.f32 %v1015, %v1163
        %v1165 = vpop.f32.mrf.mxu0
        %v1166 = vpop.f32.mrf.mxu0
        %v1167 = vadd.f32 %v1015, %v1166
        %v1168 = vpop.f32.mrf.mxu0
        %1169 = vmatprep.mubr.bf16.mxu0 %v969
        %1170 = vmatmul.mubr.bf16.gmra.mxu0 %v968
        %v1171 = vpop.f32.mrf.mxu0
        %v1172 = vadd.f32 %v1015, %v1171
        %v1173 = vpop.f32.mrf.mxu0
        %v1174 = vpop.f32.mrf.mxu0
        %v1175 = vadd.f32 %v1015, %v1174
        %v1176 = vpop.f32.mrf.mxu0
        %1177 = vmatprep.mubr.bf16.mxu0 %v971
        %1178 = vmatmul.mubr.bf16.gmra.mxu0 %v970
        %v1179 = vpop.f32.mrf.mxu0
        %v1180 = vadd.f32 %v1015, %v1179
        %v1181 = vpop.f32.mrf.mxu0
        %v1182 = vpop.f32.mrf.mxu0
        %v1183 = vadd.f32 %v1015, %v1182
        %v1184 = vpop.f32.mrf.mxu0
        %1185 = vmatprep.mubr.bf16.mxu0 %v973
        %1186 = vmatmul.mubr.bf16.gmra.mxu0 %v972
        %v1187 = vpop.f32.mrf.mxu0
        %v1188 = vadd.f32 %v1015, %v1187
        %v1189 = vpop.f32.mrf.mxu0
        %v1190 = vpop.f32.mrf.mxu0
        %v1191 = vadd.f32 %v1015, %v1190
        %v1192 = vpop.f32.mrf.mxu0
        %1193 = vmatprep.mubr.bf16.mxu0 %v975
        %1194 = vmatmul.mubr.bf16.gmra.mxu0 %v974
        %v1195 = vpop.f32.mrf.mxu0
        %v1196 = vadd.f32 %v1015, %v1195
        %v1197 = vpop.f32.mrf.mxu0
        %v1198 = vpop.f32.mrf.mxu0
        %v1199 = vadd.f32 %v1015, %v1198
        %v1200 = vpop.f32.mrf.mxu0
        %1201 = vmatprep.mubr.bf16.mxu0 %v977
        %1202 = vmatmul.mubr.bf16.gmra.mxu0 %v976
        %v1203 = vpop.f32.mrf.mxu0
        %v1204 = vadd.f32 %v1015, %v1203
        %v1205 = vpop.f32.mrf.mxu0
        %v1206 = vpop.f32.mrf.mxu0
        %v1207 = vadd.f32 %v1015, %v1206
        %v1208 = vpop.f32.mrf.mxu0
        %1209 = vdwg.mxu0
        %v1210 = vadd.f32 %v413, %v1148
        %v1211 = vadd.f32 %v414, %v1151
        %v1212 = vadd.f32 %v415, %v1156
        %v1213 = vadd.f32 %v416, %v1159
        %v1214 = vadd.f32 %v417, %v1164
        %v1215 = vadd.f32 %v418, %v1167
        %v1216 = vadd.f32 %v419, %v1172
        %v1217 = vadd.f32 %v420, %v1175
        %v1218 = vadd.f32 %v421, %v1180
        %v1219 = vadd.f32 %v422, %v1183
        %v1220 = vadd.f32 %v423, %v1188
        %v1221 = vadd.f32 %v424, %v1191
        %v1222 = vadd.f32 %v425, %v1196
        %v1223 = vadd.f32 %v426, %v1199
        %v1224 = vadd.f32 %v427, %v1204
        %v1225 = vadd.f32 %v428, %v1207
        %v1226 = vpack.c.bf16 %v1211, %v1210
        %v1227 = vpack.c.bf16 %v1213, %v1212
        %v1228 = vpack.c.bf16 %v1215, %v1214
        %v1229 = vpack.c.bf16 %v1217, %v1216
        %v1230 = vpack.c.bf16 %v1219, %v1218
        %v1231 = vpack.c.bf16 %v1221, %v1220
        %v1232 = vpack.c.bf16 %v1223, %v1222
        %v1233 = vpack.c.bf16 %v1225, %v1224
        %v1234 = vld [vmem:[#allocation8] sm:$0xff]
        %v1235 = vld [vmem:[#allocation8 + $0x8] sm:$0xff]
        %v1236 = vld [vmem:[#allocation8 + $0x10] sm:$0xff]
        %v1237 = vld [vmem:[#allocation8 + $0x18] sm:$0xff]
        %v1238 = vld [vmem:[#allocation8 + $0x20] sm:$0xff]
        %v1239 = vld [vmem:[#allocation8 + $0x28] sm:$0xff]
        %v1240 = vld [vmem:[#allocation8 + $0x30] sm:$0xff]
        %v1241 = vld [vmem:[#allocation8 + $0x38] sm:$0xff]
        %v1242 = vld [vmem:[#allocation8 + $0x40] sm:$0xff]
        %v1243 = vld [vmem:[#allocation8 + $0x48] sm:$0xff]
        %v1244 = vld [vmem:[#allocation8 + $0x50] sm:$0xff]
        %v1245 = vld [vmem:[#allocation8 + $0x58] sm:$0xff]
        %v1246 = vld [vmem:[#allocation8 + $0x60] sm:$0xff]
        %v1247 = vld [vmem:[#allocation8 + $0x68] sm:$0xff]
        %v1248 = vld [vmem:[#allocation8 + $0x70] sm:$0xff]
        %v1249 = vld [vmem:[#allocation8 + $0x78] sm:$0xff]
        %v1250 = vld [vmem:[%s6] sm:$0x3]
        %v1252 = vlaneseq
        %v1253 = vshrl.u32 %v1252, 7
        %v1254 = vsub.s32 0, %v1253
        %v1255 = vrot.slane %v1250, %v1254
        %v1256 = vlaneseq
        %v1257 = vshrl.u32 %v1256, 7
        %v1258 = vsub.s32 1, %v1257
        %v1259 = vrot.slane %v1250, %v1258
        %v1278 = vunpack.c.l.b16 %v1234
        %v1279 = vunpack.c.h.b16 %v1234
        %v1280 = vunpack.c.l.b16 %v1235
        %v1281 = vunpack.c.h.b16 %v1235
        %v1282 = vunpack.c.l.b16 %v1236
        %v1283 = vunpack.c.h.b16 %v1236
        %v1284 = vunpack.c.l.b16 %v1237
        %v1285 = vunpack.c.h.b16 %v1237
        %v1286 = vunpack.c.l.b16 %v1238
        %v1287 = vunpack.c.h.b16 %v1238
        %v1288 = vunpack.c.l.b16 %v1239
        %v1289 = vunpack.c.h.b16 %v1239
        %v1290 = vunpack.c.l.b16 %v1240
        %v1291 = vunpack.c.h.b16 %v1240
        %v1292 = vunpack.c.l.b16 %v1241
        %v1293 = vunpack.c.h.b16 %v1241
        %v1294 = vunpack.c.l.b16 %v1242
        %v1295 = vunpack.c.h.b16 %v1242
        %v1296 = vunpack.c.l.b16 %v1243
        %v1297 = vunpack.c.h.b16 %v1243
        %v1298 = vunpack.c.l.b16 %v1244
        %v1299 = vunpack.c.h.b16 %v1244
        %v1300 = vunpack.c.l.b16 %v1245
        %v1301 = vunpack.c.h.b16 %v1245
        %v1302 = vunpack.c.l.b16 %v1246
        %v1303 = vunpack.c.h.b16 %v1246
        %v1304 = vunpack.c.l.b16 %v1247
        %v1305 = vunpack.c.h.b16 %v1247
        %v1306 = vunpack.c.l.b16 %v1248
        %v1307 = vunpack.c.h.b16 %v1248
        %v1308 = vunpack.c.l.b16 %v1249
        %v1309 = vunpack.c.h.b16 %v1249
        %v1310 = vpack.c.b16 %v1280, %v1278
        %v1311 = vpack.c.b16 %v1281, %v1279
        %v1312 = vpack.c.b16 %v1284, %v1282
        %v1313 = vpack.c.b16 %v1285, %v1283
        %v1314 = vpack.c.b16 %v1288, %v1286
        %v1315 = vpack.c.b16 %v1289, %v1287
        %v1316 = vpack.c.b16 %v1292, %v1290
        %v1317 = vpack.c.b16 %v1293, %v1291
        %v1318 = vpack.c.b16 %v1296, %v1294
        %v1319 = vpack.c.b16 %v1297, %v1295
        %v1320 = vpack.c.b16 %v1300, %v1298
        %v1321 = vpack.c.b16 %v1301, %v1299
        %v1322 = vpack.c.b16 %v1304, %v1302
        %v1323 = vpack.c.b16 %v1305, %v1303
        %v1324 = vpack.c.b16 %v1308, %v1306
        %v1325 = vpack.c.b16 %v1309, %v1307
        %1342 = vmatprep.subr.bf16.mxu0 %v1325
        %1343 = vmatpush1.bf16.msra.mxu0 %v1324
        %1344 = vmatprep.subr.bf16.mxu0 %v1323
        %1345 = vmatpush1.bf16.msra.mxu0 %v1322
        %1346 = vmatprep.subr.bf16.mxu0 %v1321
        %1347 = vmatpush1.bf16.msra.mxu0 %v1320
        %1348 = vmatprep.subr.bf16.mxu0 %v1319
        %1349 = vmatpush1.bf16.msra.mxu0 %v1318
        %1350 = vmatprep.subr.bf16.mxu0 %v1317
        %1351 = vmatpush1.bf16.msra.mxu0 %v1316
        %1352 = vmatprep.subr.bf16.mxu0 %v1315
        %1353 = vmatpush1.bf16.msra.mxu0 %v1314
        %1354 = vmatprep.subr.bf16.mxu0 %v1313
        %1355 = vmatpush1.bf16.msra.mxu0 %v1312
        %1356 = vmatprep.subr.bf16.mxu0 %v1311
        %1357 = vmatpush1.bf16.msra.mxu0 %v1310
        %1358 = vmatprep.subr.bf16.mxu0 0
        %1359 = vmatpush2.bf16.msra.mxu0 0
        %1360 = vmatprep.subr.bf16.mxu0 0
        %1361 = vmatpush2.bf16.msra.mxu0 0
        %1362 = vmatprep.subr.bf16.mxu0 0
        %1363 = vmatpush2.bf16.msra.mxu0 0
        %1364 = vmatprep.subr.bf16.mxu0 0
        %1365 = vmatpush2.bf16.msra.mxu0 0
        %1366 = vmatprep.subr.bf16.mxu0 0
        %1367 = vmatpush2.bf16.msra.mxu0 0
        %1368 = vmatprep.subr.bf16.mxu0 0
        %1369 = vmatpush2.bf16.msra.mxu0 0
        %1370 = vmatprep.subr.bf16.mxu0 0
        %1371 = vmatpush2.bf16.msra.mxu0 0
        %1372 = vmatprep.subr.bf16.mxu0 0
        %1373 = vmatpush2.bf16.msra.mxu0 0
        %1374 = vmatprep.mubr.bf16.mxu0 0
        %1375 = vmatmul.mubr.bf16.gmra.mxu0 %v1226
        %v1376 = vpop.f32.mrf.mxu0
        %v1377 = vadd.f32 %v1255, %v1376
        %v1378 = vpop.f32.mrf.mxu0
        %v1379 = vadd.f32 %v1259, %v1378
        %v1380 = vpop.f32.mrf.mxu0
        %v1381 = vadd.f32 %v1255, %v1380
        %v1382 = vpop.f32.mrf.mxu0
        %v1383 = vadd.f32 %v1259, %v1382
        %1384 = vmatprep.mubr.bf16.mxu0 0
        %1385 = vmatmul.mubr.bf16.gmra.mxu0 %v1227
        %v1386 = vpop.f32.mrf.mxu0
        %v1387 = vadd.f32 %v1255, %v1386
        %v1388 = vpop.f32.mrf.mxu0
        %v1389 = vadd.f32 %v1259, %v1388
        %v1390 = vpop.f32.mrf.mxu0
        %v1391 = vadd.f32 %v1255, %v1390
        %v1392 = vpop.f32.mrf.mxu0
        %v1393 = vadd.f32 %v1259, %v1392
        %1394 = vmatprep.mubr.bf16.mxu0 0
        %1395 = vmatmul.mubr.bf16.gmra.mxu0 %v1228
        %v1396 = vpop.f32.mrf.mxu0
        %v1397 = vadd.f32 %v1255, %v1396
        %v1398 = vpop.f32.mrf.mxu0
        %v1399 = vadd.f32 %v1259, %v1398
        %v1400 = vpop.f32.mrf.mxu0
        %v1401 = vadd.f32 %v1255, %v1400
        %v1402 = vpop.f32.mrf.mxu0
        %v1403 = vadd.f32 %v1259, %v1402
        %1404 = vmatprep.mubr.bf16.mxu0 0
        %1405 = vmatmul.mubr.bf16.gmra.mxu0 %v1229
        %v1406 = vpop.f32.mrf.mxu0
        %v1407 = vadd.f32 %v1255, %v1406
        %v1408 = vpop.f32.mrf.mxu0
        %v1409 = vadd.f32 %v1259, %v1408
        %v1410 = vpop.f32.mrf.mxu0
        %v1411 = vadd.f32 %v1255, %v1410
        %v1412 = vpop.f32.mrf.mxu0
        %v1413 = vadd.f32 %v1259, %v1412
        %1414 = vmatprep.mubr.bf16.mxu0 0
        %1415 = vmatmul.mubr.bf16.gmra.mxu0 %v1230
        %v1416 = vpop.f32.mrf.mxu0
        %v1417 = vadd.f32 %v1255, %v1416
        %v1418 = vpop.f32.mrf.mxu0
        %v1419 = vadd.f32 %v1259, %v1418
        %v1420 = vpop.f32.mrf.mxu0
        %v1421 = vadd.f32 %v1255, %v1420
        %v1422 = vpop.f32.mrf.mxu0
        %v1423 = vadd.f32 %v1259, %v1422
        %1424 = vmatprep.mubr.bf16.mxu0 0
        %1425 = vmatmul.mubr.bf16.gmra.mxu0 %v1231
        %v1426 = vpop.f32.mrf.mxu0
        %v1427 = vadd.f32 %v1255, %v1426
        %v1428 = vpop.f32.mrf.mxu0
        %v1429 = vadd.f32 %v1259, %v1428
        %v1430 = vpop.f32.mrf.mxu0
        %v1431 = vadd.f32 %v1255, %v1430
        %v1432 = vpop.f32.mrf.mxu0
        %v1433 = vadd.f32 %v1259, %v1432
        %1434 = vmatprep.mubr.bf16.mxu0 0
        %1435 = vmatmul.mubr.bf16.gmra.mxu0 %v1232
        %v1436 = vpop.f32.mrf.mxu0
        %v1437 = vadd.f32 %v1255, %v1436
        %v1438 = vpop.f32.mrf.mxu0
        %v1439 = vadd.f32 %v1259, %v1438
        %v1440 = vpop.f32.mrf.mxu0
        %v1441 = vadd.f32 %v1255, %v1440
        %v1442 = vpop.f32.mrf.mxu0
        %v1443 = vadd.f32 %v1259, %v1442
        %1444 = vmatprep.mubr.bf16.mxu0 0
        %1445 = vmatmul.mubr.bf16.gmra.mxu0 %v1233
        %v1446 = vpop.f32.mrf.mxu0
        %v1447 = vadd.f32 %v1255, %v1446
        %v1448 = vpop.f32.mrf.mxu0
        %v1449 = vadd.f32 %v1259, %v1448
        %v1450 = vpop.f32.mrf.mxu0
        %v1451 = vadd.f32 %v1255, %v1450
        %v1452 = vpop.f32.mrf.mxu0
        %v1453 = vadd.f32 %v1259, %v1452
        %1454 = vdwg.mxu0
        %v1455 = vmul.f32 %v1377, %v1377
        %v1456 = vmul.f32 %v1379, %v1379
        %v1457 = vmul.f32 %v1381, %v1381
        %v1458 = vmul.f32 %v1383, %v1383
        %v1459 = vmul.f32 %v1387, %v1387
        %v1460 = vmul.f32 %v1389, %v1389
        %v1461 = vmul.f32 %v1391, %v1391
        %v1462 = vmul.f32 %v1393, %v1393
        %v1463 = vmul.f32 %v1397, %v1397
        %v1464 = vmul.f32 %v1399, %v1399
        %v1465 = vmul.f32 %v1401, %v1401
        %v1466 = vmul.f32 %v1403, %v1403
        %v1467 = vmul.f32 %v1407, %v1407
        %v1468 = vmul.f32 %v1409, %v1409
        %v1469 = vmul.f32 %v1411, %v1411
        %v1470 = vmul.f32 %v1413, %v1413
        %v1471 = vmul.f32 %v1417, %v1417
        %v1472 = vmul.f32 %v1419, %v1419
        %v1473 = vmul.f32 %v1421, %v1421
        %v1474 = vmul.f32 %v1423, %v1423
        %v1475 = vmul.f32 %v1427, %v1427
        %v1476 = vmul.f32 %v1429, %v1429
        %v1477 = vmul.f32 %v1431, %v1431
        %v1478 = vmul.f32 %v1433, %v1433
        %v1479 = vmul.f32 %v1437, %v1437
        %v1480 = vmul.f32 %v1439, %v1439
        %v1481 = vmul.f32 %v1441, %v1441
        %v1482 = vmul.f32 %v1443, %v1443
        %v1483 = vmul.f32 %v1447, %v1447
        %v1484 = vmul.f32 %v1449, %v1449
        %v1485 = vmul.f32 %v1451, %v1451
        %v1486 = vmul.f32 %v1453, %v1453
        %v1487 = vmul.f32 %v1377, %v1455
        %v1488 = vmul.f32 %v1379, %v1456
        %v1489 = vmul.f32 %v1381, %v1457
        %v1490 = vmul.f32 %v1383, %v1458
        %v1491 = vmul.f32 %v1387, %v1459
        %v1492 = vmul.f32 %v1389, %v1460
        %v1493 = vmul.f32 %v1391, %v1461
        %v1494 = vmul.f32 %v1393, %v1462
        %v1495 = vmul.f32 %v1397, %v1463
        %v1496 = vmul.f32 %v1399, %v1464
        %v1497 = vmul.f32 %v1401, %v1465
        %v1498 = vmul.f32 %v1403, %v1466
        %v1499 = vmul.f32 %v1407, %v1467
        %v1500 = vmul.f32 %v1409, %v1468
        %v1501 = vmul.f32 %v1411, %v1469
        %v1502 = vmul.f32 %v1413, %v1470
        %v1503 = vmul.f32 %v1417, %v1471
        %v1504 = vmul.f32 %v1419, %v1472
        %v1505 = vmul.f32 %v1421, %v1473
        %v1506 = vmul.f32 %v1423, %v1474
        %v1507 = vmul.f32 %v1427, %v1475
        %v1508 = vmul.f32 %v1429, %v1476
        %v1509 = vmul.f32 %v1431, %v1477
        %v1510 = vmul.f32 %v1433, %v1478
        %v1511 = vmul.f32 %v1437, %v1479
        %v1512 = vmul.f32 %v1439, %v1480
        %v1513 = vmul.f32 %v1441, %v1481
        %v1514 = vmul.f32 %v1443, %v1482
        %v1515 = vmul.f32 %v1447, %v1483
        %v1516 = vmul.f32 %v1449, %v1484
        %v1517 = vmul.f32 %v1451, %v1485
        %v1518 = vmul.f32 %v1453, %v1486
        %v1519 = vmul.f32 %v1487, 0.044715
        %v1520 = vmul.f32 %v1488, 0.044715
        %v1521 = vmul.f32 %v1489, 0.044715
        %v1522 = vmul.f32 %v1490, 0.044715
        %v1523 = vmul.f32 %v1491, 0.044715
        %v1524 = vmul.f32 %v1492, 0.044715
        %v1525 = vmul.f32 %v1493, 0.044715
        %v1526 = vmul.f32 %v1494, 0.044715
        %v1527 = vmul.f32 %v1495, 0.044715
        %v1528 = vmul.f32 %v1496, 0.044715
        %v1529 = vmul.f32 %v1497, 0.044715
        %v1530 = vmul.f32 %v1498, 0.044715
        %v1531 = vmul.f32 %v1499, 0.044715
        %v1532 = vmul.f32 %v1500, 0.044715
        %v1533 = vmul.f32 %v1501, 0.044715
        %v1534 = vmul.f32 %v1502, 0.044715
        %v1535 = vmul.f32 %v1503, 0.044715
        %v1536 = vmul.f32 %v1504, 0.044715
        %v1537 = vmul.f32 %v1505, 0.044715
        %v1538 = vmul.f32 %v1506, 0.044715
        %v1539 = vmul.f32 %v1507, 0.044715
        %v1540 = vmul.f32 %v1508, 0.044715
        %v1541 = vmul.f32 %v1509, 0.044715
        %v1542 = vmul.f32 %v1510, 0.044715
        %v1543 = vmul.f32 %v1511, 0.044715
        %v1544 = vmul.f32 %v1512, 0.044715
        %v1545 = vmul.f32 %v1513, 0.044715
        %v1546 = vmul.f32 %v1514, 0.044715
        %v1547 = vmul.f32 %v1515, 0.044715
        %v1548 = vmul.f32 %v1516, 0.044715
        %v1549 = vmul.f32 %v1517, 0.044715
        %v1550 = vmul.f32 %v1518, 0.044715
        %v1551 = vadd.f32 %v1377, %v1519
        %v1552 = vadd.f32 %v1379, %v1520
        %v1553 = vadd.f32 %v1381, %v1521
        %v1554 = vadd.f32 %v1383, %v1522
        %v1555 = vadd.f32 %v1387, %v1523
        %v1556 = vadd.f32 %v1389, %v1524
        %v1557 = vadd.f32 %v1391, %v1525
        %v1558 = vadd.f32 %v1393, %v1526
        %v1559 = vadd.f32 %v1397, %v1527
        %v1560 = vadd.f32 %v1399, %v1528
        %v1561 = vadd.f32 %v1401, %v1529
        %v1562 = vadd.f32 %v1403, %v1530
        %v1563 = vadd.f32 %v1407, %v1531
        %v1564 = vadd.f32 %v1409, %v1532
        %v1565 = vadd.f32 %v1411, %v1533
        %v1566 = vadd.f32 %v1413, %v1534
        %v1567 = vadd.f32 %v1417, %v1535
        %v1568 = vadd.f32 %v1419, %v1536
        %v1569 = vadd.f32 %v1421, %v1537
        %v1570 = vadd.f32 %v1423, %v1538
        %v1571 = vadd.f32 %v1427, %v1539
        %v1572 = vadd.f32 %v1429, %v1540
        %v1573 = vadd.f32 %v1431, %v1541
        %v1574 = vadd.f32 %v1433, %v1542
        %v1575 = vadd.f32 %v1437, %v1543
        %v1576 = vadd.f32 %v1439, %v1544
        %v1577 = vadd.f32 %v1441, %v1545
        %v1578 = vadd.f32 %v1443, %v1546
        %v1579 = vadd.f32 %v1447, %v1547
        %v1580 = vadd.f32 %v1449, %v1548
        %v1581 = vadd.f32 %v1451, %v1549
        %v1582 = vadd.f32 %v1453, %v1550
        %v1583 = vmul.f32 %v1551, 0.7978846
        %v1584 = vmul.f32 %v1552, 0.7978846
        %v1585 = vmul.f32 %v1553, 0.7978846
        %v1586 = vmul.f32 %v1554, 0.7978846
        %v1587 = vmul.f32 %v1555, 0.7978846
        %v1588 = vmul.f32 %v1556, 0.7978846
        %v1589 = vmul.f32 %v1557, 0.7978846
        %v1590 = vmul.f32 %v1558, 0.7978846
        %v1591 = vmul.f32 %v1559, 0.7978846
        %v1592 = vmul.f32 %v1560, 0.7978846
        %v1593 = vmul.f32 %v1561, 0.7978846
        %v1594 = vmul.f32 %v1562, 0.7978846
        %v1595 = vmul.f32 %v1563, 0.7978846
        %v1596 = vmul.f32 %v1564, 0.7978846
        %v1597 = vmul.f32 %v1565, 0.7978846
        %v1598 = vmul.f32 %v1566, 0.7978846
        %v1599 = vmul.f32 %v1567, 0.7978846
        %v1600 = vmul.f32 %v1568, 0.7978846
        %v1601 = vmul.f32 %v1569, 0.7978846
        %v1602 = vmul.f32 %v1570, 0.7978846
        %v1603 = vmul.f32 %v1571, 0.7978846
        %v1604 = vmul.f32 %v1572, 0.7978846
        %v1605 = vmul.f32 %v1573, 0.7978846
        %v1606 = vmul.f32 %v1574, 0.7978846
        %v1607 = vmul.f32 %v1575, 0.7978846
        %v1608 = vmul.f32 %v1576, 0.7978846
        %v1609 = vmul.f32 %v1577, 0.7978846
        %v1610 = vmul.f32 %v1578, 0.7978846
        %v1611 = vmul.f32 %v1579, 0.7978846
        %v1612 = vmul.f32 %v1580, 0.7978846
        %v1613 = vmul.f32 %v1581, 0.7978846
        %v1614 = vmul.f32 %v1582, 0.7978846
        %v1615 = vtanh.pop %v1583
        %v1616 = vtanh.pop %v1584
        %v1617 = vtanh.pop %v1585
        %v1618 = vtanh.pop %v1586
        %v1619 = vtanh.pop %v1587
        %v1620 = vtanh.pop %v1588
        %v1621 = vtanh.pop %v1589
        %v1622 = vtanh.pop %v1590
        %v1623 = vtanh.pop %v1591
        %v1624 = vtanh.pop %v1592
        %v1625 = vtanh.pop %v1593
        %v1626 = vtanh.pop %v1594
        %v1627 = vtanh.pop %v1595
        %v1628 = vtanh.pop %v1596
        %v1629 = vtanh.pop %v1597
        %v1630 = vtanh.pop %v1598
        %v1631 = vtanh.pop %v1599
        %v1632 = vtanh.pop %v1600
        %v1633 = vtanh.pop %v1601
        %v1634 = vtanh.pop %v1602
        %v1635 = vtanh.pop %v1603
        %v1636 = vtanh.pop %v1604
        %v1637 = vtanh.pop %v1605
        %v1638 = vtanh.pop %v1606
        %v1639 = vtanh.pop %v1607
        %v1640 = vtanh.pop %v1608
        %v1641 = vtanh.pop %v1609
        %v1642 = vtanh.pop %v1610
        %v1643 = vtanh.pop %v1611
        %v1644 = vtanh.pop %v1612
        %v1645 = vtanh.pop %v1613
        %v1646 = vtanh.pop %v1614
        %v1647 = vadd.f32 %v1615, 1.0
        %v1648 = vadd.f32 %v1616, 1.0
        %v1649 = vadd.f32 %v1617, 1.0
        %v1650 = vadd.f32 %v1618, 1.0
        %v1651 = vadd.f32 %v1619, 1.0
        %v1652 = vadd.f32 %v1620, 1.0
        %v1653 = vadd.f32 %v1621, 1.0
        %v1654 = vadd.f32 %v1622, 1.0
        %v1655 = vadd.f32 %v1623, 1.0
        %v1656 = vadd.f32 %v1624, 1.0
        %v1657 = vadd.f32 %v1625, 1.0
        %v1658 = vadd.f32 %v1626, 1.0
        %v1659 = vadd.f32 %v1627, 1.0
        %v1660 = vadd.f32 %v1628, 1.0
        %v1661 = vadd.f32 %v1629, 1.0
        %v1662 = vadd.f32 %v1630, 1.0
        %v1663 = vadd.f32 %v1631, 1.0
        %v1664 = vadd.f32 %v1632, 1.0
        %v1665 = vadd.f32 %v1633, 1.0
        %v1666 = vadd.f32 %v1634, 1.0
        %v1667 = vadd.f32 %v1635, 1.0
        %v1668 = vadd.f32 %v1636, 1.0
        %v1669 = vadd.f32 %v1637, 1.0
        %v1670 = vadd.f32 %v1638, 1.0
        %v1671 = vadd.f32 %v1639, 1.0
        %v1672 = vadd.f32 %v1640, 1.0
        %v1673 = vadd.f32 %v1641, 1.0
        %v1674 = vadd.f32 %v1642, 1.0
        %v1675 = vadd.f32 %v1643, 1.0
        %v1676 = vadd.f32 %v1644, 1.0
        %v1677 = vadd.f32 %v1645, 1.0
        %v1678 = vadd.f32 %v1646, 1.0
        %v1679 = vmul.f32 %v1647, 0.5
        %v1680 = vmul.f32 %v1648, 0.5
        %v1681 = vmul.f32 %v1649, 0.5
        %v1682 = vmul.f32 %v1650, 0.5
        %v1683 = vmul.f32 %v1651, 0.5
        %v1684 = vmul.f32 %v1652, 0.5
        %v1685 = vmul.f32 %v1653, 0.5
        %v1686 = vmul.f32 %v1654, 0.5
        %v1687 = vmul.f32 %v1655, 0.5
        %v1688 = vmul.f32 %v1656, 0.5
        %v1689 = vmul.f32 %v1657, 0.5
        %v1690 = vmul.f32 %v1658, 0.5
        %v1691 = vmul.f32 %v1659, 0.5
        %v1692 = vmul.f32 %v1660, 0.5
        %v1693 = vmul.f32 %v1661, 0.5
        %v1694 = vmul.f32 %v1662, 0.5
        %v1695 = vmul.f32 %v1663, 0.5
        %v1696 = vmul.f32 %v1664, 0.5
        %v1697 = vmul.f32 %v1665, 0.5
        %v1698 = vmul.f32 %v1666, 0.5
        %v1699 = vmul.f32 %v1667, 0.5
        %v1700 = vmul.f32 %v1668, 0.5
        %v1701 = vmul.f32 %v1669, 0.5
        %v1702 = vmul.f32 %v1670, 0.5
        %v1703 = vmul.f32 %v1671, 0.5
        %v1704 = vmul.f32 %v1672, 0.5
        %v1705 = vmul.f32 %v1673, 0.5
        %v1706 = vmul.f32 %v1674, 0.5
        %v1707 = vmul.f32 %v1675, 0.5
        %v1708 = vmul.f32 %v1676, 0.5
        %v1709 = vmul.f32 %v1677, 0.5
        %v1710 = vmul.f32 %v1678, 0.5
        %v1711 = vmul.f32 %v1377, %v1679
        %v1712 = vmul.f32 %v1379, %v1680
        %v1713 = vmul.f32 %v1381, %v1681
        %v1714 = vmul.f32 %v1383, %v1682
        %v1715 = vmul.f32 %v1387, %v1683
        %v1716 = vmul.f32 %v1389, %v1684
        %v1717 = vmul.f32 %v1391, %v1685
        %v1718 = vmul.f32 %v1393, %v1686
        %v1719 = vmul.f32 %v1397, %v1687
        %v1720 = vmul.f32 %v1399, %v1688
        %v1721 = vmul.f32 %v1401, %v1689
        %v1722 = vmul.f32 %v1403, %v1690
        %v1723 = vmul.f32 %v1407, %v1691
        %v1724 = vmul.f32 %v1409, %v1692
        %v1725 = vmul.f32 %v1411, %v1693
        %v1726 = vmul.f32 %v1413, %v1694
        %v1727 = vmul.f32 %v1417, %v1695
        %v1728 = vmul.f32 %v1419, %v1696
        %v1729 = vmul.f32 %v1421, %v1697
        %v1730 = vmul.f32 %v1423, %v1698
        %v1731 = vmul.f32 %v1427, %v1699
        %v1732 = vmul.f32 %v1429, %v1700
        %v1733 = vmul.f32 %v1431, %v1701
        %v1734 = vmul.f32 %v1433, %v1702
        %v1735 = vmul.f32 %v1437, %v1703
        %v1736 = vmul.f32 %v1439, %v1704
        %v1737 = vmul.f32 %v1441, %v1705
        %v1738 = vmul.f32 %v1443, %v1706
        %v1739 = vmul.f32 %v1447, %v1707
        %v1740 = vmul.f32 %v1449, %v1708
        %v1741 = vmul.f32 %v1451, %v1709
        %v1742 = vmul.f32 %v1453, %v1710
        %v1743 = vpack.c.bf16 %v1713, %v1711
        %v1744 = vpack.c.bf16 %v1714, %v1712
        %v1745 = vpack.c.bf16 %v1717, %v1715
        %v1746 = vpack.c.bf16 %v1718, %v1716
        %v1747 = vpack.c.bf16 %v1721, %v1719
        %v1748 = vpack.c.bf16 %v1722, %v1720
        %v1749 = vpack.c.bf16 %v1725, %v1723
        %v1750 = vpack.c.bf16 %v1726, %v1724
        %v1751 = vpack.c.bf16 %v1729, %v1727
        %v1752 = vpack.c.bf16 %v1730, %v1728
        %v1753 = vpack.c.bf16 %v1733, %v1731
        %v1754 = vpack.c.bf16 %v1734, %v1732
        %v1755 = vpack.c.bf16 %v1737, %v1735
        %v1756 = vpack.c.bf16 %v1738, %v1736
        %v1757 = vpack.c.bf16 %v1741, %v1739
        %v1758 = vpack.c.bf16 %v1742, %v1740
        %v1759 = vld [vmem:[#allocation10] sm:$0xf]
        %v1760 = vld [vmem:[#allocation10 + $0x4] sm:$0xf]
        %v1761 = vld [vmem:[#allocation10 + $0x8] sm:$0xf]
        %v1762 = vld [vmem:[#allocation10 + $0xc] sm:$0xf]
        %v1763 = vld [vmem:[#allocation10 + $0x10] sm:$0xf]
        %v1764 = vld [vmem:[#allocation10 + $0x14] sm:$0xf]
        %v1765 = vld [vmem:[#allocation10 + $0x18] sm:$0xf]
        %v1766 = vld [vmem:[#allocation10 + $0x1c] sm:$0xf]
        %v1767 = vld [vmem:[#allocation10 + $0x20] sm:$0xf]
        %v1768 = vld [vmem:[#allocation10 + $0x24] sm:$0xf]
        %v1769 = vld [vmem:[#allocation10 + $0x28] sm:$0xf]
        %v1770 = vld [vmem:[#allocation10 + $0x2c] sm:$0xf]
        %v1771 = vld [vmem:[#allocation10 + $0x30] sm:$0xf]
        %v1772 = vld [vmem:[#allocation10 + $0x34] sm:$0xf]
        %v1773 = vld [vmem:[#allocation10 + $0x38] sm:$0xf]
        %v1774 = vld [vmem:[#allocation10 + $0x3c] sm:$0xf]
        %v1775 = vld [vmem:[#allocation10 + $0x40] sm:$0xf]
        %v1776 = vld [vmem:[#allocation10 + $0x44] sm:$0xf]
        %v1777 = vld [vmem:[#allocation10 + $0x48] sm:$0xf]
        %v1778 = vld [vmem:[#allocation10 + $0x4c] sm:$0xf]
        %v1779 = vld [vmem:[#allocation10 + $0x50] sm:$0xf]
        %v1780 = vld [vmem:[#allocation10 + $0x54] sm:$0xf]
        %v1781 = vld [vmem:[#allocation10 + $0x58] sm:$0xf]
        %v1782 = vld [vmem:[#allocation10 + $0x5c] sm:$0xf]
        %v1783 = vld [vmem:[#allocation10 + $0x60] sm:$0xf]
        %v1784 = vld [vmem:[#allocation10 + $0x64] sm:$0xf]
        %v1785 = vld [vmem:[#allocation10 + $0x68] sm:$0xf]
        %v1786 = vld [vmem:[#allocation10 + $0x6c] sm:$0xf]
        %v1787 = vld [vmem:[#allocation10 + $0x70] sm:$0xf]
        %v1788 = vld [vmem:[#allocation10 + $0x74] sm:$0xf]
        %v1789 = vld [vmem:[#allocation10 + $0x78] sm:$0xf]
        %v1790 = vld [vmem:[#allocation10 + $0x7c] sm:$0xf]
        %v1791 = vld [vmem:[%s8] sm:$0x1]
        %v1793 = vlaneseq
        %v1794 = vshrl.u32 %v1793, 7
        %v1795 = vsub.s32 0, %v1794
        %v1796 = vrot.slane %v1791, %v1795
        %v1830 = vunpack.c.l.b16 %v1759
        %v1831 = vunpack.c.l.b16 %v1760
        %v1832 = vunpack.c.l.b16 %v1761
        %v1833 = vunpack.c.l.b16 %v1762
        %v1834 = vunpack.c.l.b16 %v1763
        %v1835 = vunpack.c.l.b16 %v1764
        %v1836 = vunpack.c.l.b16 %v1765
        %v1837 = vunpack.c.l.b16 %v1766
        %v1838 = vunpack.c.l.b16 %v1767
        %v1839 = vunpack.c.l.b16 %v1768
        %v1840 = vunpack.c.l.b16 %v1769
        %v1841 = vunpack.c.l.b16 %v1770
        %v1842 = vunpack.c.l.b16 %v1771
        %v1843 = vunpack.c.l.b16 %v1772
        %v1844 = vunpack.c.l.b16 %v1773
        %v1845 = vunpack.c.l.b16 %v1774
        %v1846 = vunpack.c.l.b16 %v1775
        %v1847 = vunpack.c.l.b16 %v1776
        %v1848 = vunpack.c.l.b16 %v1777
        %v1849 = vunpack.c.l.b16 %v1778
        %v1850 = vunpack.c.l.b16 %v1779
        %v1851 = vunpack.c.l.b16 %v1780
        %v1852 = vunpack.c.l.b16 %v1781
        %v1853 = vunpack.c.l.b16 %v1782
        %v1854 = vunpack.c.l.b16 %v1783
        %v1855 = vunpack.c.l.b16 %v1784
        %v1856 = vunpack.c.l.b16 %v1785
        %v1857 = vunpack.c.l.b16 %v1786
        %v1858 = vunpack.c.l.b16 %v1787
        %v1859 = vunpack.c.l.b16 %v1788
        %v1860 = vunpack.c.l.b16 %v1789
        %v1861 = vunpack.c.l.b16 %v1790
        %v1862 = vpack.c.b16 %v1831, %v1830
        %v1863 = vpack.c.b16 %v1833, %v1832
        %v1864 = vpack.c.b16 %v1835, %v1834
        %v1865 = vpack.c.b16 %v1837, %v1836
        %v1866 = vpack.c.b16 %v1839, %v1838
        %v1867 = vpack.c.b16 %v1841, %v1840
        %v1868 = vpack.c.b16 %v1843, %v1842
        %v1869 = vpack.c.b16 %v1845, %v1844
        %v1870 = vpack.c.b16 %v1847, %v1846
        %v1871 = vpack.c.b16 %v1849, %v1848
        %v1872 = vpack.c.b16 %v1851, %v1850
        %v1873 = vpack.c.b16 %v1853, %v1852
        %v1874 = vpack.c.b16 %v1855, %v1854
        %v1875 = vpack.c.b16 %v1857, %v1856
        %v1876 = vpack.c.b16 %v1859, %v1858
        %v1877 = vpack.c.b16 %v1861, %v1860
        %1894 = vmatprep.subr.bf16.mxu0 0
        %1895 = vmatpush1.bf16.msra.mxu0 %v1869
        %1896 = vmatprep.subr.bf16.mxu0 0
        %1897 = vmatpush1.bf16.msra.mxu0 %v1868
        %1898 = vmatprep.subr.bf16.mxu0 0
        %1899 = vmatpush1.bf16.msra.mxu0 %v1867
        %1900 = vmatprep.subr.bf16.mxu0 0
        %1901 = vmatpush1.bf16.msra.mxu0 %v1866
        %1902 = vmatprep.subr.bf16.mxu0 0
        %1903 = vmatpush1.bf16.msra.mxu0 %v1865
        %1904 = vmatprep.subr.bf16.mxu0 0
        %1905 = vmatpush1.bf16.msra.mxu0 %v1864
        %1906 = vmatprep.subr.bf16.mxu0 0
        %1907 = vmatpush1.bf16.msra.mxu0 %v1863
        %1908 = vmatprep.subr.bf16.mxu0 0
        %1909 = vmatpush1.bf16.msra.mxu0 %v1862
        %1910 = vmatprep.subr.bf16.mxu0 0
        %1911 = vmatpush2.bf16.msra.mxu0 %v1877
        %1912 = vmatprep.subr.bf16.mxu0 0
        %1913 = vmatpush2.bf16.msra.mxu0 %v1876
        %1914 = vmatprep.subr.bf16.mxu0 0
        %1915 = vmatpush2.bf16.msra.mxu0 %v1875
        %1916 = vmatprep.subr.bf16.mxu0 0
        %1917 = vmatpush2.bf16.msra.mxu0 %v1874
        %1918 = vmatprep.subr.bf16.mxu0 0
        %1919 = vmatpush2.bf16.msra.mxu0 %v1873
        %1920 = vmatprep.subr.bf16.mxu0 0
        %1921 = vmatpush2.bf16.msra.mxu0 %v1872
        %1922 = vmatprep.subr.bf16.mxu0 0
        %1923 = vmatpush2.bf16.msra.mxu0 %v1871
        %1924 = vmatprep.subr.bf16.mxu0 0
        %1925 = vmatpush2.bf16.msra.mxu0 %v1870
        %1926 = vmatprep.mubr.bf16.mxu0 %v1744
        %1927 = vmatmul.mubr.bf16.gmra.mxu0 %v1743
        %v1928 = vpop.f32.mrf.mxu0
        %v1929 = vadd.f32 %v1796, %v1928
        %v1930 = vpop.f32.mrf.mxu0
        %v1931 = vpop.f32.mrf.mxu0
        %v1932 = vadd.f32 %v1796, %v1931
        %v1933 = vpop.f32.mrf.mxu0
        %1934 = vmatprep.mubr.bf16.mxu0 %v1746
        %1935 = vmatmul.mubr.bf16.gmra.mxu0 %v1745
        %v1936 = vpop.f32.mrf.mxu0
        %v1937 = vadd.f32 %v1796, %v1936
        %v1938 = vpop.f32.mrf.mxu0
        %v1939 = vpop.f32.mrf.mxu0
        %v1940 = vadd.f32 %v1796, %v1939
        %v1941 = vpop.f32.mrf.mxu0
        %1942 = vmatprep.mubr.bf16.mxu0 %v1748
        %1943 = vmatmul.mubr.bf16.gmra.mxu0 %v1747
        %v1944 = vpop.f32.mrf.mxu0
        %v1945 = vadd.f32 %v1796, %v1944
        %v1946 = vpop.f32.mrf.mxu0
        %v1947 = vpop.f32.mrf.mxu0
        %v1948 = vadd.f32 %v1796, %v1947
        %v1949 = vpop.f32.mrf.mxu0
        %1950 = vmatprep.mubr.bf16.mxu0 %v1750
        %1951 = vmatmul.mubr.bf16.gmra.mxu0 %v1749
        %v1952 = vpop.f32.mrf.mxu0
        %v1953 = vadd.f32 %v1796, %v1952
        %v1954 = vpop.f32.mrf.mxu0
        %v1955 = vpop.f32.mrf.mxu0
        %v1956 = vadd.f32 %v1796, %v1955
        %v1957 = vpop.f32.mrf.mxu0
        %1958 = vmatprep.mubr.bf16.mxu0 %v1752
        %1959 = vmatmul.mubr.bf16.gmra.mxu0 %v1751
        %v1960 = vpop.f32.mrf.mxu0
        %v1961 = vadd.f32 %v1796, %v1960
        %v1962 = vpop.f32.mrf.mxu0
        %v1963 = vpop.f32.mrf.mxu0
        %v1964 = vadd.f32 %v1796, %v1963
        %v1965 = vpop.f32.mrf.mxu0
        %1966 = vmatprep.mubr.bf16.mxu0 %v1754
        %1967 = vmatmul.mubr.bf16.gmra.mxu0 %v1753
        %v1968 = vpop.f32.mrf.mxu0
        %v1969 = vadd.f32 %v1796, %v1968
        %v1970 = vpop.f32.mrf.mxu0
        %v1971 = vpop.f32.mrf.mxu0
        %v1972 = vadd.f32 %v1796, %v1971
        %v1973 = vpop.f32.mrf.mxu0
        %1974 = vmatprep.mubr.bf16.mxu0 %v1756
        %1975 = vmatmul.mubr.bf16.gmra.mxu0 %v1755
        %v1976 = vpop.f32.mrf.mxu0
        %v1977 = vadd.f32 %v1796, %v1976
        %v1978 = vpop.f32.mrf.mxu0
        %v1979 = vpop.f32.mrf.mxu0
        %v1980 = vadd.f32 %v1796, %v1979
        %v1981 = vpop.f32.mrf.mxu0
        %1982 = vmatprep.mubr.bf16.mxu0 %v1758
        %1983 = vmatmul.mubr.bf16.gmra.mxu0 %v1757
        %v1984 = vpop.f32.mrf.mxu0
        %v1985 = vadd.f32 %v1796, %v1984
        %v1986 = vpop.f32.mrf.mxu0
        %v1987 = vpop.f32.mrf.mxu0
        %v1988 = vadd.f32 %v1796, %v1987
        %v1989 = vpop.f32.mrf.mxu0
        %1990 = vdwg.mxu0
        %v1991 = vadd.f32 %v429, %v1929
        %v1992 = vadd.f32 %v430, %v1932
        %v1993 = vadd.f32 %v431, %v1937
        %v1994 = vadd.f32 %v432, %v1940
        %v1995 = vadd.f32 %v433, %v1945
        %v1996 = vadd.f32 %v434, %v1948
        %v1997 = vadd.f32 %v435, %v1953
        %v1998 = vadd.f32 %v436, %v1956
        %v1999 = vadd.f32 %v437, %v1961
        %v2000 = vadd.f32 %v438, %v1964
        %v2001 = vadd.f32 %v439, %v1969
        %v2002 = vadd.f32 %v440, %v1972
        %v2003 = vadd.f32 %v441, %v1977
        %v2004 = vadd.f32 %v442, %v1980
        %v2005 = vadd.f32 %v443, %v1985
        %v2006 = vadd.f32 %v444, %v1988
        %2007 = vst [vmem:[%s409] sm:$0xff] %v1210
        %2008 = vst [vmem:[%s409 + $0x10] sm:$0xff] %v1211
        %2009 = vst [vmem:[%s409 + $0x20] sm:$0xff] %v1212
        %2010 = vst [vmem:[%s409 + $0x30] sm:$0xff] %v1213
        %2011 = vst [vmem:[%s409 + $0x40] sm:$0xff] %v1214
        %2012 = vst [vmem:[%s409 + $0x50] sm:$0xff] %v1215
        %2013 = vst [vmem:[%s409 + $0x60] sm:$0xff] %v1216
        %2014 = vst [vmem:[%s409 + $0x70] sm:$0xff] %v1217
        %2015 = vst [vmem:[%s409 + $0x80] sm:$0xff] %v1218
        %2016 = vst [vmem:[%s409 + $0x90] sm:$0xff] %v1219
        %2017 = vst [vmem:[%s409 + $0xa0] sm:$0xff] %v1220
        %2018 = vst [vmem:[%s409 + $0xb0] sm:$0xff] %v1221
        %2019 = vst [vmem:[%s409 + $0xc0] sm:$0xff] %v1222
        %2020 = vst [vmem:[%s409 + $0xd0] sm:$0xff] %v1223
        %2021 = vst [vmem:[%s409 + $0xe0] sm:$0xff] %v1224
        %2022 = vst [vmem:[%s409 + $0xf0] sm:$0xff] %v1225
        %2023 = vst [vmem:[%s409 + $0x8] sm:$0xff] %v1991
        %2024 = vst [vmem:[%s409 + $0x18] sm:$0xff] %v1992
        %2025 = vst [vmem:[%s409 + $0x28] sm:$0xff] %v1993
        %2026 = vst [vmem:[%s409 + $0x38] sm:$0xff] %v1994
        %2027 = vst [vmem:[%s409 + $0x48] sm:$0xff] %v1995
        %2028 = vst [vmem:[%s409 + $0x58] sm:$0xff] %v1996
        %2029 = vst [vmem:[%s409 + $0x68] sm:$0xff] %v1997
        %2030 = vst [vmem:[%s409 + $0x78] sm:$0xff] %v1998
        %2031 = vst [vmem:[%s409 + $0x88] sm:$0xff] %v1999
        %2032 = vst [vmem:[%s409 + $0x98] sm:$0xff] %v2000
        %2033 = vst [vmem:[%s409 + $0xa8] sm:$0xff] %v2001
        %2034 = vst [vmem:[%s409 + $0xb8] sm:$0xff] %v2002
        %2035 = vst [vmem:[%s409 + $0xc8] sm:$0xff] %v2003
        %2036 = vst [vmem:[%s409 + $0xd8] sm:$0xff] %v2004
        %2037 = vst [vmem:[%s409 + $0xe8] sm:$0xff] %v2005
        %2038 = vst [vmem:[%s409 + $0xf8] sm:$0xff] %v2006
        %s2039 = sand.u32 %s230, 1
        %s2040 = scalar_lea.sflag [#allocation4], %s2039
        %s2041 = sand.u32 %s230, 1
        %s2042 = smul.addr %s2041, 256
        %s2043 = scalar_lea.vmem [#allocation11], %s2042
        // Predicated region
        $region77: #{tpu_custom_call.1} parent=55 // pred_check
          %p2044 = pneg %p240
        $region78: #{tpu_custom_call.1} parent=55 // pred_check_branch
          %2046 = sbr.rel (%p2044) target = $region80
        $region79: #{tpu_custom_call.1} parent=55 // pred_region
          %s2047 = smul.u32 16, %s28
          %s2049 = ssub.s32 4096, 4096
          %2050 = vsyncadd %s2040, %s2049
          %s2051 = smul.addr %s2047, 2
          %s2052 = smul.addr %s2051, 128
          %s2053 = scalar_lea.hbm %s9, %s2052
          %s2054 = sshll.u32 %s2043, 4
          %s2055 = int_to_ptr.vmem [resolvable:$true] %s2054
          %2060 = dma.vmem_to_hbm [thread:$0]  %s2055, 4096, %s2053, %s2040, 256, 256, 16
        $region80: #{tpu_custom_call.1} parent=55 // pred_fallthru
          _
      $region56: #{tpu_custom_call.1} parent=5 // pred_fallthru
        _
      %p2061 = scmp.le.s32.totalorder 2, %s23
      // Predicated region
      $region81: #{tpu_custom_call.1} parent=5 // pred_check
        %p2062 = pneg %p2061
      $region82: #{tpu_custom_call.1} parent=5 // pred_check_branch
        %2064 = sbr.rel (%p2062) target = $region84
      $region83: #{tpu_custom_call.1} parent=5 // pred_region
        %s2065 = ssub.s32 %s23, 2
        // Predicated region
        $region85: #{tpu_custom_call.1} parent=83 // pred_check
          %p2066 = pneg %p246
        $region86: #{tpu_custom_call.1} parent=83 // pred_check_branch
          %2068 = sbr.rel (%p2066) target = $region88
        $region87: #{tpu_custom_call.1} parent=83 // pred_region
          %s2069 = sand.u32 %s231, 1
          %s2070 = scalar_lea.sflag [#allocation4], %s2069
          %s2071 = sand.u32 %s231, 1
          %s2072 = smul.addr %s2071, 256
          %s2073 = scalar_lea.vmem [#allocation11], %s2072
          %2074 = dma.done %s2070, 4096
        $region88: #{tpu_custom_call.1} parent=83 // pred_fallthru
          _
      $region84: #{tpu_custom_call.1} parent=5 // pred_fallthru
        _
    $region6: #{tpu_custom_call.1} parent=1 // loop_footer
      %s27 = sadd.s32 1, %s23
    $region7: #{tpu_custom_call.1} parent=1 // loop_footer_branch
      %22 = sbr.rel target = $region3
    $region8: #{tpu_custom_call.1} parent=1 // loop_exit
      _
    %2075 = vsyncpa [#allocation3], 1
    %s2076 = scalar_lea.sflag [#allocation3], 1
    %2077 = vsyncpa %s2076, 1
    %2078 = vsyncpa [#allocation6], 1
    %2079 = vsyncpa [#allocation9], 1
    %2080 = vsyncpa [#allocation4], 1
    %s2081 = scalar_lea.sflag [#allocation4], 1
    %2082 = vsyncpa %s2081, 1

</llo_original>
